<compile_context>
chip_gen: v6e
topology: v6e:2x2x1
jax: 0.10.0
libtpu: 0.0.40
codegen_flags: <defaults>
</compile_context>

<pallas_src>
import math

import jax
import jax.numpy as jnp
from jax import lax
from jax.experimental import pallas as pl
from jax.experimental.pallas import tpu as pltpu

K = 7                      # conv kernel size
PAD = 3                    # conv padding
_STATIC_C_LIMIT = 16       # fully unroll channel loops up to this C
_TARGET_BLOCK_BYTES = 4 * 1024 * 1024   # target per-step input block (~2-4 MiB)


def _round_up(x, m):
    return (x + m - 1) // m * m


def spatial_attention_kernel(x_ref, w_ref, s_ref, o_ref, pool_ref, col_ref):
    """One grid step = Bt batch elements.

    x_ref   : (Bt, C, H, W)  input block (VMEM)
    w_ref   : (98,)          conv taps with BN scale (and 1/C on the sum channel)
                             already folded in (SMEM)
    s_ref   : (1,)           fused scalar shift = conv_bias*bn_scale + bn_shift (SMEM)
    o_ref   : (Bt, C, H, W)  output block (VMEM)
    pool_ref: (2, H+6, W+6)  scratch: zero-padded [channel-max, channel-sum] maps
    col_ref : (2, H+6, W)    scratch: staging for the lane(dx)-shifted conv columns
    """
    Bt, C, H, W = x_ref.shape
    Hp = H + 2 * PAD
    Wp = W + 2 * PAD

    # Conv accumulator count: bound live vregs at large H*W (avoid spills) while still
    # breaking the serial add chain for small tiles.
    vregs_per_map = ((H + 7) // 8) * ((W + 127) // 128)
    if vregs_per_map <= 4:
        n_acc = 4
    elif vregs_per_map <= 16:
        n_acc = 2
    else:
        n_acc = 1

    # --- zero only the 3-wide borders of the padded pool scratch (== Conv2d zero
    #     padding). Done once per grid step; the Bt loop below only rewrites the
    #     interior, so the borders stay valid for every packed element.
    pool_ref[:, pl.ds(0, PAD), :] = jnp.zeros((2, PAD, Wp), jnp.float32)
    pool_ref[:, pl.ds(PAD + H, PAD), :] = jnp.zeros((2, PAD, Wp), jnp.float32)
    pool_ref[:, :, pl.ds(0, PAD)] = jnp.zeros((2, Hp, PAD), jnp.float32)
    pool_ref[:, :, pl.ds(PAD + W, PAD)] = jnp.zeros((2, Hp, PAD), jnp.float32)

    @pl.loop(0, Bt)
    def _per_element(b):
        # --- ChannelPool: fused max + sum in a single pass over C.
        x0 = x_ref[b, 0].astype(jnp.float32)
        if C <= _STATIC_C_LIMIT:
            # Fully unrolled, 2 independent max/sum chains (matters when the spatial
            # tile is only 1-2 vregs and the pool is latency-bound).
            if C == 1:
                mx, sm = x0, x0
            else:
                x1 = x_ref[b, 1].astype(jnp.float32)
                mx0, sm0 = x0, x0
                mx1, sm1 = x1, x1
                for c in range(2, C):
                    xc = x_ref[b, c].astype(jnp.float32)
                    if c % 2 == 0:
                        mx0 = jnp.maximum(mx0, xc)
                        sm0 = sm0 + xc
                    else:
                        mx1 = jnp.maximum(mx1, xc)
                        sm1 = sm1 + xc
                mx = jnp.maximum(mx0, mx1)
                sm = sm0 + sm1
        else:
            # Large C: a visible fori_loop keeps code size / vreg live ranges bounded.
            # The pool is HBM-bound, so the serial carry chain is not the limiter here.
            def pool_body(c, carry):
                mx_c, sm_c = carry
                xc = x_ref[b, c].astype(jnp.float32)
                return jnp.maximum(mx_c, xc), sm_c + xc

            mx, sm = lax.fori_loop(1, C, pool_body, (x0, x0), unroll=8)

        pool_ref[0, pl.ds(PAD, H), pl.ds(PAD, W)] = mx
        pool_ref[1, pl.ds(PAD, H), pl.ds(PAD, W)] = sm   # 1/C folded into w_ref

        # --- 7x7 conv, 2 -> 1 channels.
        # The 7 lane (dx) shifts are hoisted out of the 98-tap loop (14 shifted loads)
        # and staged through col_ref, so every dy shift is a cheap sublane-offset load
        # (vld slots) instead of an in-register sublane slice (XLU rotates).
        accs = [jnp.zeros((H, W), jnp.float32) for _ in range(n_acc)]
        for c in range(2):
            for dx in range(K):
                g = c * K + dx
                slot = g % 2                       # alternate buffers: avoids WAR serialization
                col_ref[slot] = pool_ref[c, :, pl.ds(dx, W)]
                a = g % n_acc
                for dy in range(K):
                    accs[a] = accs[a] + (w_ref[c * (K * K) + dy * K + dx]
                                         * col_ref[slot, pl.ds(dy, H), :])
        while len(accs) > 1:                       # pairwise combine (tree)
            accs = [accs[i] + accs[i + 1] for i in range(0, len(accs), 2)]
        acc = accs[0]

        # --- fused conv-bias/BN shift + Sigmoid (BN scale already folded into weights).
        att = jax.nn.sigmoid(acc + s_ref[0])       # (H, W) float32

        # --- apply attention per channel in the input dtype (no full f32 copy of x).
        att_x = att.astype(o_ref.dtype)
        if C <= _STATIC_C_LIMIT:
            for c in range(C):
                o_ref[b, c] = (x_ref[b, c] * att_x).astype(o_ref.dtype)
        else:
            def apply_body(c, carry):
                o_ref[b, c] = (x_ref[b, c] * att_x).astype(o_ref.dtype)
                return carry

            lax.fori_loop(0, C, apply_body, 0, unroll=8)


def _vmem_capacity_bytes():
    try:
        return int(pltpu.get_tpu_info().vmem_capacity_bytes)
    except Exception:
        return 64 * 1024 * 1024    # conservative (v7x-sized) fallback


@jax.jit
def spatial_attention_block(x, conv_w, conv_b, bn_gamma, bn_beta, bn_mean, bn_var):
    """x: (B, C, H, W). conv_w: (1, 2, 7, 7). conv_b: (1,). BatchNorm2d(1) eval semantics."""
    B, C, H, W = x.shape
    eps = 1e-5
    Hp, Wp = H + 2 * PAD, W + 2 * PAD

    # --- fold eval-mode BatchNorm into the conv weights / a single scalar shift.
    bn_scale = bn_gamma[0] / jnp.sqrt(bn_var[0] + eps)
    bn_shift = bn_beta[0] - bn_mean[0] * bn_scale
    w = conv_w[0].astype(jnp.float32) * bn_scale          # (2, 7, 7): BN scale folded in
    w = w.at[1].multiply(1.0 / C)                         # mean channel -> sum channel
    w_flat = w.reshape(2 * K * K)                         # (98,) 1-D SMEM array
    shift = (conv_b[0].astype(jnp.float32) * bn_scale + bn_shift).reshape(1)

    # --- generation-aware VMEM budget + batch packing (Bt elements per grid step).
    itemsize = jnp.dtype(x.dtype).itemsize
    # VMEM-resident bytes per element per array, accounting for (8,128) layout padding.
    padded_elem = C * _round_up(H, 8) * _round_up(W, 128) * itemsize
    scratch_bytes = (2 * _round_up(Hp, 8) * _round_up(Wp, 128) * 4
                     + 2 * _round_up(Hp, 8) * _round_up(W, 128) * 4)
    vmem_budget = int(0.8 * _vmem_capacity_bytes())        # ~51 MiB v7x, ~102 MiB v5e/v6e

    bt = 1
    for cand in range(1, B + 1):
        if B % cand:
            continue
        pipeline = 2 * 2 * cand * padded_elem + scratch_bytes   # double-buffered in + out
        if cand * padded_elem <= _TARGET_BLOCK_BYTES and pipeline <= vmem_budget:
            bt = cand
    pipeline_bytes = 2 * 2 * bt * padded_elem + scratch_bytes
    vmem_limit = int(min(vmem_budget,
                         max(32 * 1024 * 1024, pipeline_bytes + 8 * 1024 * 1024)))

    grid_spec = pltpu.PrefetchScalarGridSpec(
        num_scalar_prefetch=0,
        grid=(B // bt,),
        in_specs=[
            pl.BlockSpec((bt, C, H, W), lambda i: (i, 0, 0, 0)),
            pl.BlockSpec(memory_space=pltpu.MemorySpace.SMEM),
            pl.BlockSpec(memory_space=pltpu.MemorySpace.SMEM),
        ],
        out_specs=pl.BlockSpec((bt, C, H, W), lambda i: (i, 0, 0, 0)),
        scratch_shapes=[
            pltpu.VMEM((2, Hp, Wp), jnp.float32),   # padded pooled maps
            pltpu.VMEM((2, Hp, W), jnp.float32),    # dx-shifted column staging
        ],
    )

    return pl.pallas_call(
        spatial_attention_kernel,
        out_shape=jax.ShapeDtypeStruct((B, C, H, W), x.dtype),
        grid_spec=grid_spec,
        compiler_params=pltpu.CompilerParams(
            dimension_semantics=("parallel",),
            vmem_limit_bytes=vmem_limit,
        ),
    )(x, w_flat, shift)


def reference(x, conv_w, conv_b, bn_gamma, bn_beta, bn_mean, bn_var):
    """Pure-JAX reference mirroring the PyTorch forward (eval-mode BN)."""
    eps = 1e-5
    x_pool = jnp.concatenate(
        [jnp.max(x, axis=1, keepdims=True), jnp.mean(x, axis=1, keepdims=True)],
        axis=1,
    )
    y = lax.conv_general_dilated(
        x_pool, conv_w, window_strides=(1, 1), padding=((PAD, PAD), (PAD, PAD)),
        dimension_numbers=("NCHW", "OIHW", "NCHW"),
    ) + conv_b.reshape(1, 1, 1, 1)
    y = (y - bn_mean.reshape(1, 1, 1, 1)) / jnp.sqrt(bn_var.reshape(1, 1, 1, 1) + eps)
    y = y * bn_gamma.reshape(1, 1, 1, 1) + bn_beta.reshape(1, 1, 1, 1)
    att = jax.nn.sigmoid(y)
    return x * att


def _run_case(key, B, C, H, W, default_bn):
    kx, kw, kb, kg, kbt, km, kv = jax.random.split(key, 7)

    x = jax.random.normal(kx, (B, C, H, W), dtype=jnp.float32)

    # Conv2d(2, 1, kernel_size=7): weight (1, 2, 7, 7), bias (1,)
    fan_in = 2 * K * K
    bound = 1.0 / math.sqrt(fan_in)
    conv_w = jax.random.uniform(kw, (1, 2, K, K), jnp.float32, -bound, bound)
    conv_b = jax.random.uniform(kb, (1,), jnp.float32, -bound, bound)

    if default_bn:
        # PyTorch-default BatchNorm2d(1) parameters / running stats.
        bn_gamma = jnp.ones((1,), jnp.float32)
        bn_beta = jnp.zeros((1,), jnp.float32)
        bn_mean = jnp.zeros((1,), jnp.float32)
        bn_var = jnp.ones((1,), jnp.float32)
    else:
        # Non-trivial running stats to exercise the BN folding.
        bn_gamma = jax.random.uniform(kg, (1,), jnp.float32, 0.5, 1.5)
        bn_beta = 0.1 * jax.random.normal(kbt, (1,), jnp.float32)
        bn_mean = 0.1 * jax.random.normal(km, (1,), jnp.float32)
        bn_var = jax.random.uniform(kv, (1,), jnp.float32, 0.5, 1.5)

    out = spatial_attention_block(x, conv_w, conv_b, bn_gamma, bn_beta, bn_mean, bn_var)
    out = jax.block_until_ready(out)

    ref = reference(x, conv_w, conv_b, bn_gamma, bn_beta, bn_mean, bn_var)
    assert out.shape == (B, C, H, W)
    err = float(jnp.max(jnp.abs(out - ref)))
    assert jnp.allclose(out, ref, atol=1e-4, rtol=1e-4), err


if __name__ == "__main__":
    key = jax.random.PRNGKey(0)
    k0, k1, k2 = jax.random.split(key, 3)

    # Spec-sized case (W < 128 -> lane-masked stores; static channel path; Bt = B).
    _run_case(k0, B=2, C=4, H=16, W=16, default_bn=True)

    # Lane-dense case (W = 128) with non-trivial BatchNorm running stats.
    _run_case(k1, B=2, C=8, H=16, W=128, default_bn=False)

    # Larger case: exercises the fori_loop channel path (C > 16), the reduced
    # conv-accumulator count, and a multi-step batch-packed grid (Bt = 2, 2 steps).
    _run_case(k2, B=4, C=64, H=64, W=128, default_bn=False)

    print("KERNEL_OK")
</pallas_src>

<mosaic_0001>
module attributes {stable_mosaic.version = 11 : i64} {
  func.func @spatial_attention_kernel(%arg0: i32, %arg1: memref<2x4x16x16xf32, #tpu.memory_space<vmem>>, %arg2: memref<98xf32, #tpu.memory_space<smem>>, %arg3: memref<1xf32, #tpu.memory_space<smem>>, %arg4: memref<2x4x16x16xf32, #tpu.memory_space<vmem>>, %arg5: memref<2x22x22xf32, #tpu.memory_space<vmem>>, %arg6: memref<2x22x16xf32, #tpu.memory_space<vmem>>) attributes {dimension_semantics = [#tpu.dimension_semantics<parallel>], iteration_bounds = array<i64: 1>, scalar_prefetch = 0 : i64, scratch_operands = 2 : i64, tpu.core_type = #tpu.core_type<tc>, window_params = [{transform_indices = @transform_0, window_bounds = array<i64: 2, 4, 16, 16>}, {transform_indices = @transform_1, window_bounds = array<i64: 98>}, {transform_indices = @transform_2, window_bounds = array<i64: 1>}, {transform_indices = @transform_3, window_bounds = array<i64: 2, 4, 16, 16>}]} {
    %cst = arith.constant 0.000000e+00 : f32
    %0 = vector.broadcast %cst : f32 to vector<2x3x22xf32>
    %c0 = arith.constant 0 : index
    %c0_0 = arith.constant 0 : index
    %c0_1 = arith.constant 0 : index
    %1 = vector.load %arg5[%c0, %c0_0, %c0_1] : memref<2x22x22xf32, #tpu.memory_space<vmem>>, vector<2x3x22xf32>
    tpu.vector_store %arg5[%c0, %c0_0, %c0_1], %0 {strides = array<i32>} : memref<2x22x22xf32, #tpu.memory_space<vmem>>, vector<2x3x22xf32>,
    %cst_2 = arith.constant 0.000000e+00 : f32
    %2 = vector.broadcast %cst_2 : f32 to vector<2x3x22xf32>
    %c0_3 = arith.constant 0 : index
    %c19 = arith.constant 19 : index
    %c0_4 = arith.constant 0 : index
    %3 = vector.load %arg5[%c0_3, %c19, %c0_4] : memref<2x22x22xf32, #tpu.memory_space<vmem>>, vector<2x3x22xf32>
    tpu.vector_store %arg5[%c0_3, %c19, %c0_4], %2 {strides = array<i32>} : memref<2x22x22xf32, #tpu.memory_space<vmem>>, vector<2x3x22xf32>,
    %cst_5 = arith.constant 0.000000e+00 : f32
    %4 = vector.broadcast %cst_5 : f32 to vector<2x22x3xf32>
    %c0_6 = arith.constant 0 : index
    %c0_7 = arith.constant 0 : index
    %c0_8 = arith.constant 0 : index
    %5 = vector.load %arg5[%c0_6, %c0_7, %c0_8] : memref<2x22x22xf32, #tpu.memory_space<vmem>>, vector<2x22x3xf32>
    tpu.vector_store %arg5[%c0_6, %c0_7, %c0_8], %4 {strides = array<i32>} : memref<2x22x22xf32, #tpu.memory_space<vmem>>, vector<2x22x3xf32>,
    %cst_9 = arith.constant 0.000000e+00 : f32
    %6 = vector.broadcast %cst_9 : f32 to vector<2x22x3xf32>
    %c0_10 = arith.constant 0 : index
    %c0_11 = arith.constant 0 : index
    %c19_12 = arith.constant 19 : index
    %7 = vector.load %arg5[%c0_10, %c0_11, %c19_12] : memref<2x22x22xf32, #tpu.memory_space<vmem>>, vector<2x22x3xf32>
    tpu.vector_store %arg5[%c0_10, %c0_11, %c19_12], %6 {strides = array<i32>} : memref<2x22x22xf32, #tpu.memory_space<vmem>>, vector<2x22x3xf32>,
    %c0_i32 = arith.constant 0 : i32
    %c2_i32 = arith.constant 2 : i32
    %8 = arith.addi %c0_i32, %c2_i32 : i32
    %c1_i32 = arith.constant 1 : i32
    scf.for %arg7 = %c0_i32 to %8 step %c1_i32  : i32 {
      %c1_i32_14 = arith.constant 1 : i32
      %9 = arith.muli %arg7, %c1_i32_14 : i32
      %c0_i32_15 = arith.constant 0 : i32
      %10 = arith.addi %c0_i32_15, %9 : i32
      %11 = arith.index_cast %10 : i32 to index
      %c0_16 = arith.constant 0 : index
      %c0_17 = arith.constant 0 : index
      %c0_18 = arith.constant 0 : index
      %12 = vector.load %arg1[%11, %c0_16, %c0_17, %c0_18] : memref<2x4x16x16xf32, #tpu.memory_space<vmem>>, vector<1x1x16x16xf32>
      %13 = vector.shape_cast %12 : vector<1x1x16x16xf32> to vector<16x16xf32>
      %14 = arith.index_cast %10 : i32 to index
      %c1 = arith.constant 1 : index
      %c0_19 = arith.constant 0 : index
      %c0_20 = arith.constant 0 : index
      %15 = vector.load %arg1[%14, %c1, %c0_19, %c0_20] : memref<2x4x16x16xf32, #tpu.memory_space<vmem>>, vector<1x1x16x16xf32>
      %16 = vector.shape_cast %15 : vector<1x1x16x16xf32> to vector<16x16xf32>
      %17 = arith.index_cast %10 : i32 to index
      %c2 = arith.constant 2 : index
      %c0_21 = arith.constant 0 : index
      %c0_22 = arith.constant 0 : index
      %18 = vector.load %arg1[%17, %c2, %c0_21, %c0_22] : memref<2x4x16x16xf32, #tpu.memory_space<vmem>>, vector<1x1x16x16xf32>
      %19 = vector.shape_cast %18 : vector<1x1x16x16xf32> to vector<16x16xf32>
      %20 = arith.maximumf %13, %19 : vector<16x16xf32>
      %21 = arith.addf %13, %19 : vector<16x16xf32>
      %22 = arith.index_cast %10 : i32 to index
      %c3 = arith.constant 3 : index
      %c0_23 = arith.constant 0 : index
      %c0_24 = arith.constant 0 : index
      %23 = vector.load %arg1[%22, %c3, %c0_23, %c0_24] : memref<2x4x16x16xf32, #tpu.memory_space<vmem>>, vector<1x1x16x16xf32>
      %24 = vector.shape_cast %23 : vector<1x1x16x16xf32> to vector<16x16xf32>
      %25 = arith.maximumf %16, %24 : vector<16x16xf32>
      %26 = arith.addf %16, %24 : vector<16x16xf32>
      %27 = arith.maximumf %20, %25 : vector<16x16xf32>
      %28 = arith.addf %21, %26 : vector<16x16xf32>
      %c0_25 = arith.constant 0 : index
      %c3_26 = arith.constant 3 : index
      %c3_27 = arith.constant 3 : index
      %29 = vector.load %arg5[%c0_25, %c3_26, %c3_27] : memref<2x22x22xf32, #tpu.memory_space<vmem>>, vector<1x16x16xf32>
      %30 = vector.shape_cast %29 : vector<1x16x16xf32> to vector<16x16xf32>
      %31 = vector.shape_cast %27 : vector<16x16xf32> to vector<1x16x16xf32>
      tpu.vector_store %arg5[%c0_25, %c3_26, %c3_27], %31 {strides = array<i32>} : memref<2x22x22xf32, #tpu.memory_space<vmem>>, vector<1x16x16xf32>,
      %c1_28 = arith.constant 1 : index
      %c3_29 = arith.constant 3 : index
      %c3_30 = arith.constant 3 : index
      %32 = vector.load %arg5[%c1_28, %c3_29, %c3_30] : memref<2x22x22xf32, #tpu.memory_space<vmem>>, vector<1x16x16xf32>
      %33 = vector.shape_cast %32 : vector<1x16x16xf32> to vector<16x16xf32>
      %34 = vector.shape_cast %28 : vector<16x16xf32> to vector<1x16x16xf32>
      tpu.vector_store %arg5[%c1_28, %c3_29, %c3_30], %34 {strides = array<i32>} : memref<2x22x22xf32, #tpu.memory_space<vmem>>, vector<1x16x16xf32>,
      %cst_31 = arith.constant 0.000000e+00 : f32
      %35 = vector.broadcast %cst_31 : f32 to vector<16x16xf32>
      %cst_32 = arith.constant 0.000000e+00 : f32
      %36 = vector.broadcast %cst_32 : f32 to vector<16x16xf32>
      %cst_33 = arith.constant 0.000000e+00 : f32
      %37 = vector.broadcast %cst_33 : f32 to vector<16x16xf32>
      %cst_34 = arith.constant 0.000000e+00 : f32
      %38 = vector.broadcast %cst_34 : f32 to vector<16x16xf32>
      %c0_35 = arith.constant 0 : index
      %c0_36 = arith.constant 0 : index
      %c0_37 = arith.constant 0 : index
      %39 = vector.load %arg5[%c0_35, %c0_36, %c0_37] : memref<2x22x22xf32, #tpu.memory_space<vmem>>, vector<1x22x16xf32>
      %40 = vector.shape_cast %39 : vector<1x22x16xf32> to vector<22x16xf32>
      %c0_38 = arith.constant 0 : index
      %c0_39 = arith.constant 0 : index
      %c0_40 = arith.constant 0 : index
      %41 = vector.load %arg6[%c0_38, %c0_39, %c0_40] : memref<2x22x16xf32, #tpu.memory_space<vmem>>, vector<1x22x16xf32>
      %42 = vector.shape_cast %41 : vector<1x22x16xf32> to vector<22x16xf32>
      %43 = vector.shape_cast %40 : vector<22x16xf32> to vector<1x22x16xf32>
      tpu.vector_store %arg6[%c0_38, %c0_39, %c0_40], %43 {strides = array<i32>} : memref<2x22x16xf32, #tpu.memory_space<vmem>>, vector<1x22x16xf32>,
      %c0_41 = arith.constant 0 : index
      %44 = memref.load %arg2[%c0_41] : memref<98xf32, #tpu.memory_space<smem>>
      %c0_42 = arith.constant 0 : index
      %c0_43 = arith.constant 0 : index
      %c0_44 = arith.constant 0 : index
      %45 = vector.load %arg6[%c0_42, %c0_43, %c0_44] : memref<2x22x16xf32, #tpu.memory_space<vmem>>, vector<1x16x16xf32>
      %46 = vector.shape_cast %45 : vector<1x16x16xf32> to vector<16x16xf32>
      %47 = vector.broadcast %44 : f32 to vector<16x16xf32>
      %48 = arith.mulf %47, %46 : vector<16x16xf32>
      %49 = arith.addf %35, %48 : vector<16x16xf32>
      %c7 = arith.constant 7 : index
      %50 = memref.load %arg2[%c7] : memref<98xf32, #tpu.memory_space<smem>>
      %c0_45 = arith.constant 0 : index
      %c1_46 = arith.constant 1 : index
      %c0_47 = arith.constant 0 : index
      %51 = vector.load %arg6[%c0_45, %c1_46, %c0_47] : memref<2x22x16xf32, #tpu.memory_space<vmem>>, vector<1x16x16xf32>
      %52 = vector.shape_cast %51 : vector<1x16x16xf32> to vector<16x16xf32>
      %53 = vector.broadcast %50 : f32 to vector<16x16xf32>
      %54 = arith.mulf %53, %52 : vector<16x16xf32>
      %55 = arith.addf %49, %54 : vector<16x16xf32>
      %c14 = arith.constant 14 : index
      %56 = memref.load %arg2[%c14] : memref<98xf32, #tpu.memory_space<smem>>
      %c0_48 = arith.constant 0 : index
      %c2_49 = arith.constant 2 : index
      %c0_50 = arith.constant 0 : index
      %57 = vector.load %arg6[%c0_48, %c2_49, %c0_50] : memref<2x22x16xf32, #tpu.memory_space<vmem>>, vector<1x16x16xf32>
      %58 = vector.shape_cast %57 : vector<1x16x16xf32> to vector<16x16xf32>
      %59 = vector.broadcast %56 : f32 to vector<16x16xf32>
      %60 = arith.mulf %59, %58 : vector<16x16xf32>
      %61 = arith.addf %55, %60 : vector<16x16xf32>
      %c21 = arith.constant 21 : index
      %62 = memref.load %arg2[%c21] : memref<98xf32, #tpu.memory_space<smem>>
      %c0_51 = arith.constant 0 : index
      %c3_52 = arith.constant 3 : index
      %c0_53 = arith.constant 0 : index
      %63 = vector.load %arg6[%c0_51, %c3_52, %c0_53] : memref<2x22x16xf32, #tpu.memory_space<vmem>>, vector<1x16x16xf32>
      %64 = vector.shape_cast %63 : vector<1x16x16xf32> to vector<16x16xf32>
      %65 = vector.broadcast %62 : f32 to vector<16x16xf32>
      %66 = arith.mulf %65, %64 : vector<16x16xf32>
      %67 = arith.addf %61, %66 : vector<16x16xf32>
      %c28 = arith.constant 28 : index
      %68 = memref.load %arg2[%c28] : memref<98xf32, #tpu.memory_space<smem>>
      %c0_54 = arith.constant 0 : index
      %c4 = arith.constant 4 : index
      %c0_55 = arith.constant 0 : index
      %69 = vector.load %arg6[%c0_54, %c4, %c0_55] : memref<2x22x16xf32, #tpu.memory_space<vmem>>, vector<1x16x16xf32>
      %70 = vector.shape_cast %69 : vector<1x16x16xf32> to vector<16x16xf32>
      %71 = vector.broadcast %68 : f32 to vector<16x16xf32>
      %72 = arith.mulf %71, %70 : vector<16x16xf32>
      %73 = arith.addf %67, %72 : vector<16x16xf32>
      %c35 = arith.constant 35 : index
      %74 = memref.load %arg2[%c35] : memref<98xf32, #tpu.memory_space<smem>>
      %c0_56 = arith.constant 0 : index
      %c5 = arith.constant 5 : index
      %c0_57 = arith.constant 0 : index
      %75 = vector.load %arg6[%c0_56, %c5, %c0_57] : memref<2x22x16xf32, #tpu.memory_space<vmem>>, vector<1x16x16xf32>
      %76 = vector.shape_cast %75 : vector<1x16x16xf32> to vector<16x16xf32>
      %77 = vector.broadcast %74 : f32 to vector<16x16xf32>
      %78 = arith.mulf %77, %76 : vector<16x16xf32>
      %79 = arith.addf %73, %78 : vector<16x16xf32>
      %c42 = arith.constant 42 : index
      %80 = memref.load %arg2[%c42] : memref<98xf32, #tpu.memory_space<smem>>
      %c0_58 = arith.constant 0 : index
      %c6 = arith.constant 6 : index
      %c0_59 = arith.constant 0 : index
      %81 = vector.load %arg6[%c0_58, %c6, %c0_59] : memref<2x22x16xf32, #tpu.memory_space<vmem>>, vector<1x16x16xf32>
      %82 = vector.shape_cast %81 : vector<1x16x16xf32> to vector<16x16xf32>
      %83 = vector.broadcast %80 : f32 to vector<16x16xf32>
      %84 = arith.mulf %83, %82 : vector<16x16xf32>
      %85 = arith.addf %79, %84 : vector<16x16xf32>
      %c0_60 = arith.constant 0 : index
      %c0_61 = arith.constant 0 : index
      %c1_62 = arith.constant 1 : index
      %86 = vector.load %arg5[%c0_60, %c0_61, %c1_62] : memref<2x22x22xf32, #tpu.memory_space<vmem>>, vector<1x22x16xf32>
      %87 = vector.shape_cast %86 : vector<1x22x16xf32> to vector<22x16xf32>
      %c1_63 = arith.constant 1 : index
      %c0_64 = arith.constant 0 : index
      %c0_65 = arith.constant 0 : index
      %88 = vector.load %arg6[%c1_63, %c0_64, %c0_65] : memref<2x22x16xf32, #tpu.memory_space<vmem>>, vector<1x22x16xf32>
      %89 = vector.shape_cast %88 : vector<1x22x16xf32> to vector<22x16xf32>
      %90 = vector.shape_cast %87 : vector<22x16xf32> to vector<1x22x16xf32>
      tpu.vector_store %arg6[%c1_63, %c0_64, %c0_65], %90 {strides = array<i32>} : memref<2x22x16xf32, #tpu.memory_space<vmem>>, vector<1x22x16xf32>,
      %c1_66 = arith.constant 1 : index
      %91 = memref.load %arg2[%c1_66] : memref<98xf32, #tpu.memory_space<smem>>
      %c1_67 = arith.constant 1 : index
      %c0_68 = arith.constant 0 : index
      %c0_69 = arith.constant 0 : index
      %92 = vector.load %arg6[%c1_67, %c0_68, %c0_69] : memref<2x22x16xf32, #tpu.memory_space<vmem>>, vector<1x16x16xf32>
      %93 = vector.shape_cast %92 : vector<1x16x16xf32> to vector<16x16xf32>
      %94 = vector.broadcast %91 : f32 to vector<16x16xf32>
      %95 = arith.mulf %94, %93 : vector<16x16xf32>
      %96 = arith.addf %36, %95 : vector<16x16xf32>
      %c8 = arith.constant 8 : index
      %97 = memref.load %arg2[%c8] : memref<98xf32, #tpu.memory_space<smem>>
      %c1_70 = arith.constant 1 : index
      %c1_71 = arith.constant 1 : index
      %c0_72 = arith.constant 0 : index
      %98 = vector.load %arg6[%c1_70, %c1_71, %c0_72] : memref<2x22x16xf32, #tpu.memory_space<vmem>>, vector<1x16x16xf32>
      %99 = vector.shape_cast %98 : vector<1x16x16xf32> to vector<16x16xf32>
      %100 = vector.broadcast %97 : f32 to vector<16x16xf32>
      %101 = arith.mulf %100, %99 : vector<16x16xf32>
      %102 = arith.addf %96, %101 : vector<16x16xf32>
      %c15 = arith.constant 15 : index
      %103 = memref.load %arg2[%c15] : memref<98xf32, #tpu.memory_space<smem>>
      %c1_73 = arith.constant 1 : index
      %c2_74 = arith.constant 2 : index
      %c0_75 = arith.constant 0 : index
      %104 = vector.load %arg6[%c1_73, %c2_74, %c0_75] : memref<2x22x16xf32, #tpu.memory_space<vmem>>, vector<1x16x16xf32>
      %105 = vector.shape_cast %104 : vector<1x16x16xf32> to vector<16x16xf32>
      %106 = vector.broadcast %103 : f32 to vector<16x16xf32>
      %107 = arith.mulf %106, %105 : vector<16x16xf32>
      %108 = arith.addf %102, %107 : vector<16x16xf32>
      %c22 = arith.constant 22 : index
      %109 = memref.load %arg2[%c22] : memref<98xf32, #tpu.memory_space<smem>>
      %c1_76 = arith.constant 1 : index
      %c3_77 = arith.constant 3 : index
      %c0_78 = arith.constant 0 : index
      %110 = vector.load %arg6[%c1_76, %c3_77, %c0_78] : memref<2x22x16xf32, #tpu.memory_space<vmem>>, vector<1x16x16xf32>
      %111 = vector.shape_cast %110 : vector<1x16x16xf32> to vector<16x16xf32>
      %112 = vector.broadcast %109 : f32 to vector<16x16xf32>
      %113 = arith.mulf %112, %111 : vector<16x16xf32>
      %114 = arith.addf %108, %113 : vector<16x16xf32>
      %c29 = arith.constant 29 : index
      %115 = memref.load %arg2[%c29] : memref<98xf32, #tpu.memory_space<smem>>
      %c1_79 = arith.constant 1 : index
      %c4_80 = arith.constant 4 : index
      %c0_81 = arith.constant 0 : index
      %116 = vector.load %arg6[%c1_79, %c4_80, %c0_81] : memref<2x22x16xf32, #tpu.memory_space<vmem>>, vector<1x16x16xf32>
      %117 = vector.shape_cast %116 : vector<1x16x16xf32> to vector<16x16xf32>
      %118 = vector.broadcast %115 : f32 to vector<16x16xf32>
      %119 = arith.mulf %118, %117 : vector<16x16xf32>
      %120 = arith.addf %114, %119 : vector<16x16xf32>
      %c36 = arith.constant 36 : index
      %121 = memref.load %arg2[%c36] : memref<98xf32, #tpu.memory_space<smem>>
      %c1_82 = arith.constant 1 : index
      %c5_83 = arith.constant 5 : index
      %c0_84 = arith.constant 0 : index
      %122 = vector.load %arg6[%c1_82, %c5_83, %c0_84] : memref<2x22x16xf32, #tpu.memory_space<vmem>>, vector<1x16x16xf32>
      %123 = vector.shape_cast %122 : vector<1x16x16xf32> to vector<16x16xf32>
      %124 = vector.broadcast %121 : f32 to vector<16x16xf32>
      %125 = arith.mulf %124, %123 : vector<16x16xf32>
      %126 = arith.addf %120, %125 : vector<16x16xf32>
      %c43 = arith.constant 43 : index
      %127 = memref.load %arg2[%c43] : memref<98xf32, #tpu.memory_space<smem>>
      %c1_85 = arith.constant 1 : index
      %c6_86 = arith.constant 6 : index
      %c0_87 = arith.constant 0 : index
      %128 = vector.load %arg6[%c1_85, %c6_86, %c0_87] : memref<2x22x16xf32, #tpu.memory_space<vmem>>, vector<1x16x16xf32>
      %129 = vector.shape_cast %128 : vector<1x16x16xf32> to vector<16x16xf32>
      %130 = vector.broadcast %127 : f32 to vector<16x16xf32>
      %131 = arith.mulf %130, %129 : vector<16x16xf32>
      %132 = arith.addf %126, %131 : vector<16x16xf32>
      %c0_88 = arith.constant 0 : index
      %c0_89 = arith.constant 0 : index
      %c2_90 = arith.constant 2 : index
      %133 = vector.load %arg5[%c0_88, %c0_89, %c2_90] : memref<2x22x22xf32, #tpu.memory_space<vmem>>, vector<1x22x16xf32>
      %134 = vector.shape_cast %133 : vector<1x22x16xf32> to vector<22x16xf32>
      %c0_91 = arith.constant 0 : index
      %c0_92 = arith.constant 0 : index
      %c0_93 = arith.constant 0 : index
      %135 = vector.load %arg6[%c0_91, %c0_92, %c0_93] : memref<2x22x16xf32, #tpu.memory_space<vmem>>, vector<1x22x16xf32>
      %136 = vector.shape_cast %135 : vector<1x22x16xf32> to vector<22x16xf32>
      %137 = vector.shape_cast %134 : vector<22x16xf32> to vector<1x22x16xf32>
      tpu.vector_store %arg6[%c0_91, %c0_92, %c0_93], %137 {strides = array<i32>} : memref<2x22x16xf32, #tpu.memory_space<vmem>>, vector<1x22x16xf32>,
      %c2_94 = arith.constant 2 : index
      %138 = memref.load %arg2[%c2_94] : memref<98xf32, #tpu.memory_space<smem>>
      %c0_95 = arith.constant 0 : index
      %c0_96 = arith.constant 0 : index
      %c0_97 = arith.constant 0 : index
      %139 = vector.load %arg6[%c0_95, %c0_96, %c0_97] : memref<2x22x16xf32, #tpu.memory_space<vmem>>, vector<1x16x16xf32>
      %140 = vector.shape_cast %139 : vector<1x16x16xf32> to vector<16x16xf32>
      %141 = vector.broadcast %138 : f32 to vector<16x16xf32>
      %142 = arith.mulf %141, %140 : vector<16x16xf32>
      %143 = arith.addf %37, %142 : vector<16x16xf32>
      %c9 = arith.constant 9 : index
      %144 = memref.load %arg2[%c9] : memref<98xf32, #tpu.memory_space<smem>>
      %c0_98 = arith.constant 0 : index
      %c1_99 = arith.constant 1 : index
      %c0_100 = arith.constant 0 : index
      %145 = vector.load %arg6[%c0_98, %c1_99, %c0_100] : memref<2x22x16xf32, #tpu.memory_space<vmem>>, vector<1x16x16xf32>
      %146 = vector.shape_cast %145 : vector<1x16x16xf32> to vector<16x16xf32>
      %147 = vector.broadcast %144 : f32 to vector<16x16xf32>
      %148 = arith.mulf %147, %146 : vector<16x16xf32>
      %149 = arith.addf %143, %148 : vector<16x16xf32>
      %c16 = arith.constant 16 : index
      %150 = memref.load %arg2[%c16] : memref<98xf32, #tpu.memory_space<smem>>
      %c0_101 = arith.constant 0 : index
      %c2_102 = arith.constant 2 : index
      %c0_103 = arith.constant 0 : index
      %151 = vector.load %arg6[%c0_101, %c2_102, %c0_103] : memref<2x22x16xf32, #tpu.memory_space<vmem>>, vector<1x16x16xf32>
      %152 = vector.shape_cast %151 : vector<1x16x16xf32> to vector<16x16xf32>
      %153 = vector.broadcast %150 : f32 to vector<16x16xf32>
      %154 = arith.mulf %153, %152 : vector<16x16xf32>
      %155 = arith.addf %149, %154 : vector<16x16xf32>
      %c23 = arith.constant 23 : index
      %156 = memref.load %arg2[%c23] : memref<98xf32, #tpu.memory_space<smem>>
      %c0_104 = arith.constant 0 : index
      %c3_105 = arith.constant 3 : index
      %c0_106 = arith.constant 0 : index
      %157 = vector.load %arg6[%c0_104, %c3_105, %c0_106] : memref<2x22x16xf32, #tpu.memory_space<vmem>>, vector<1x16x16xf32>
      %158 = vector.shape_cast %157 : vector<1x16x16xf32> to vector<16x16xf32>
      %159 = vector.broadcast %156 : f32 to vector<16x16xf32>
      %160 = arith.mulf %159, %158 : vector<16x16xf32>
      %161 = arith.addf %155, %160 : vector<16x16xf32>
      %c30 = arith.constant 30 : index
      %162 = memref.load %arg2[%c30] : memref<98xf32, #tpu.memory_space<smem>>
      %c0_107 = arith.constant 0 : index
      %c4_108 = arith.constant 4 : index
      %c0_109 = arith.constant 0 : index
      %163 = vector.load %arg6[%c0_107, %c4_108, %c0_109] : memref<2x22x16xf32, #tpu.memory_space<vmem>>, vector<1x16x16xf32>
      %164 = vector.shape_cast %163 : vector<1x16x16xf32> to vector<16x16xf32>
      %165 = vector.broadcast %162 : f32 to vector<16x16xf32>
      %166 = arith.mulf %165, %164 : vector<16x16xf32>
      %167 = arith.addf %161, %166 : vector<16x16xf32>
      %c37 = arith.constant 37 : index
      %168 = memref.load %arg2[%c37] : memref<98xf32, #tpu.memory_space<smem>>
      %c0_110 = arith.constant 0 : index
      %c5_111 = arith.constant 5 : index
      %c0_112 = arith.constant 0 : index
      %169 = vector.load %arg6[%c0_110, %c5_111, %c0_112] : memref<2x22x16xf32, #tpu.memory_space<vmem>>, vector<1x16x16xf32>
      %170 = vector.shape_cast %169 : vector<1x16x16xf32> to vector<16x16xf32>
      %171 = vector.broadcast %168 : f32 to vector<16x16xf32>
      %172 = arith.mulf %171, %170 : vector<16x16xf32>
      %173 = arith.addf %167, %172 : vector<16x16xf32>
      %c44 = arith.constant 44 : index
      %174 = memref.load %arg2[%c44] : memref<98xf32, #tpu.memory_space<smem>>
      %c0_113 = arith.constant 0 : index
      %c6_114 = arith.constant 6 : index
      %c0_115 = arith.constant 0 : index
      %175 = vector.load %arg6[%c0_113, %c6_114, %c0_115] : memref<2x22x16xf32, #tpu.memory_space<vmem>>, vector<1x16x16xf32>
      %176 = vector.shape_cast %175 : vector<1x16x16xf32> to vector<16x16xf32>
      %177 = vector.broadcast %174 : f32 to vector<16x16xf32>
      %178 = arith.mulf %177, %176 : vector<16x16xf32>
      %179 = arith.addf %173, %178 : vector<16x16xf32>
      %c0_116 = arith.constant 0 : index
      %c0_117 = arith.constant 0 : index
      %c3_118 = arith.constant 3 : index
      %180 = vector.load %arg5[%c0_116, %c0_117, %c3_118] : memref<2x22x22xf32, #tpu.memory_space<vmem>>, vector<1x22x16xf32>
      %181 = vector.shape_cast %180 : vector<1x22x16xf32> to vector<22x16xf32>
      %c1_119 = arith.constant 1 : index
      %c0_120 = arith.constant 0 : index
      %c0_121 = arith.constant 0 : index
      %182 = vector.load %arg6[%c1_119, %c0_120, %c0_121] : memref<2x22x16xf32, #tpu.memory_space<vmem>>, vector<1x22x16xf32>
      %183 = vector.shape_cast %182 : vector<1x22x16xf32> to vector<22x16xf32>
      %184 = vector.shape_cast %181 : vector<22x16xf32> to vector<1x22x16xf32>
      tpu.vector_store %arg6[%c1_119, %c0_120, %c0_121], %184 {strides = array<i32>} : memref<2x22x16xf32, #tpu.memory_space<vmem>>, vector<1x22x16xf32>,
      %c3_122 = arith.constant 3 : index
      %185 = memref.load %arg2[%c3_122] : memref<98xf32, #tpu.memory_space<smem>>
      %c1_123 = arith.constant 1 : index
      %c0_124 = arith.constant 0 : index
      %c0_125 = arith.constant 0 : index
      %186 = vector.load %arg6[%c1_123, %c0_124, %c0_125] : memref<2x22x16xf32, #tpu.memory_space<vmem>>, vector<1x16x16xf32>
      %187 = vector.shape_cast %186 : vector<1x16x16xf32> to vector<16x16xf32>
      %188 = vector.broadcast %185 : f32 to vector<16x16xf32>
      %189 = arith.mulf %188, %187 : vector<16x16xf32>
      %190 = arith.addf %38, %189 : vector<16x16xf32>
      %c10 = arith.constant 10 : index
      %191 = memref.load %arg2[%c10] : memref<98xf32, #tpu.memory_space<smem>>
      %c1_126 = arith.constant 1 : index
      %c1_127 = arith.constant 1 : index
      %c0_128 = arith.constant 0 : index
      %192 = vector.load %arg6[%c1_126, %c1_127, %c0_128] : memref<2x22x16xf32, #tpu.memory_space<vmem>>, vector<1x16x16xf32>
      %193 = vector.shape_cast %192 : vector<1x16x16xf32> to vector<16x16xf32>
      %194 = vector.broadcast %191 : f32 to vector<16x16xf32>
      %195 = arith.mulf %194, %193 : vector<16x16xf32>
      %196 = arith.addf %190, %195 : vector<16x16xf32>
      %c17 = arith.constant 17 : index
      %197 = memref.load %arg2[%c17] : memref<98xf32, #tpu.memory_space<smem>>
      %c1_129 = arith.constant 1 : index
      %c2_130 = arith.constant 2 : index
      %c0_131 = arith.constant 0 : index
      %198 = vector.load %arg6[%c1_129, %c2_130, %c0_131] : memref<2x22x16xf32, #tpu.memory_space<vmem>>, vector<1x16x16xf32>
      %199 = vector.shape_cast %198 : vector<1x16x16xf32> to vector<16x16xf32>
      %200 = vector.broadcast %197 : f32 to vector<16x16xf32>
      %201 = arith.mulf %200, %199 : vector<16x16xf32>
      %202 = arith.addf %196, %201 : vector<16x16xf32>
      %c24 = arith.constant 24 : index
      %203 = memref.load %arg2[%c24] : memref<98xf32, #tpu.memory_space<smem>>
      %c1_132 = arith.constant 1 : index
      %c3_133 = arith.constant 3 : index
      %c0_134 = arith.constant 0 : index
      %204 = vector.load %arg6[%c1_132, %c3_133, %c0_134] : memref<2x22x16xf32, #tpu.memory_space<vmem>>, vector<1x16x16xf32>
      %205 = vector.shape_cast %204 : vector<1x16x16xf32> to vector<16x16xf32>
      %206 = vector.broadcast %203 : f32 to vector<16x16xf32>
      %207 = arith.mulf %206, %205 : vector<16x16xf32>
      %208 = arith.addf %202, %207 : vector<16x16xf32>
      %c31 = arith.constant 31 : index
      %209 = memref.load %arg2[%c31] : memref<98xf32, #tpu.memory_space<smem>>
      %c1_135 = arith.constant 1 : index
      %c4_136 = arith.constant 4 : index
      %c0_137 = arith.constant 0 : index
      %210 = vector.load %arg6[%c1_135, %c4_136, %c0_137] : memref<2x22x16xf32, #tpu.memory_space<vmem>>, vector<1x16x16xf32>
      %211 = vector.shape_cast %210 : vector<1x16x16xf32> to vector<16x16xf32>
      %212 = vector.broadcast %209 : f32 to vector<16x16xf32>
      %213 = arith.mulf %212, %211 : vector<16x16xf32>
      %214 = arith.addf %208, %213 : vector<16x16xf32>
      %c38 = arith.constant 38 : index
      %215 = memref.load %arg2[%c38] : memref<98xf32, #tpu.memory_space<smem>>
      %c1_138 = arith.constant 1 : index
      %c5_139 = arith.constant 5 : index
      %c0_140 = arith.constant 0 : index
      %216 = vector.load %arg6[%c1_138, %c5_139, %c0_140] : memref<2x22x16xf32, #tpu.memory_space<vmem>>, vector<1x16x16xf32>
      %217 = vector.shape_cast %216 : vector<1x16x16xf32> to vector<16x16xf32>
      %218 = vector.broadcast %215 : f32 to vector<16x16xf32>
      %219 = arith.mulf %218, %217 : vector<16x16xf32>
      %220 = arith.addf %214, %219 : vector<16x16xf32>
      %c45 = arith.constant 45 : index
      %221 = memref.load %arg2[%c45] : memref<98xf32, #tpu.memory_space<smem>>
      %c1_141 = arith.constant 1 : index
      %c6_142 = arith.constant 6 : index
      %c0_143 = arith.constant 0 : index
      %222 = vector.load %arg6[%c1_141, %c6_142, %c0_143] : memref<2x22x16xf32, #tpu.memory_space<vmem>>, vector<1x16x16xf32>
      %223 = vector.shape_cast %222 : vector<1x16x16xf32> to vector<16x16xf32>
      %224 = vector.broadcast %221 : f32 to vector<16x16xf32>
      %225 = arith.mulf %224, %223 : vector<16x16xf32>
      %226 = arith.addf %220, %225 : vector<16x16xf32>
      %c0_144 = arith.constant 0 : index
      %c0_145 = arith.constant 0 : index
      %c4_146 = arith.constant 4 : index
      %227 = vector.load %arg5[%c0_144, %c0_145, %c4_146] : memref<2x22x22xf32, #tpu.memory_space<vmem>>, vector<1x22x16xf32>
      %228 = vector.shape_cast %227 : vector<1x22x16xf32> to vector<22x16xf32>
      %c0_147 = arith.constant 0 : index
      %c0_148 = arith.constant 0 : index
      %c0_149 = arith.constant 0 : index
      %229 = vector.load %arg6[%c0_147, %c0_148, %c0_149] : memref<2x22x16xf32, #tpu.memory_space<vmem>>, vector<1x22x16xf32>
      %230 = vector.shape_cast %229 : vector<1x22x16xf32> to vector<22x16xf32>
      %231 = vector.shape_cast %228 : vector<22x16xf32> to vector<1x22x16xf32>
      tpu.vector_store %arg6[%c0_147, %c0_148, %c0_149], %231 {strides = array<i32>} : memref<2x22x16xf32, #tpu.memory_space<vmem>>, vector<1x22x16xf32>,
      %c4_150 = arith.constant 4 : index
      %232 = memref.load %arg2[%c4_150] : memref<98xf32, #tpu.memory_space<smem>>
      %c0_151 = arith.constant 0 : index
      %c0_152 = arith.constant 0 : index
      %c0_153 = arith.constant 0 : index
      %233 = vector.load %arg6[%c0_151, %c0_152, %c0_153] : memref<2x22x16xf32, #tpu.memory_space<vmem>>, vector<1x16x16xf32>
      %234 = vector.shape_cast %233 : vector<1x16x16xf32> to vector<16x16xf32>
      %235 = vector.broadcast %232 : f32 to vector<16x16xf32>
      %236 = arith.mulf %235, %234 : vector<16x16xf32>
      %237 = arith.addf %85, %236 : vector<16x16xf32>
      %c11 = arith.constant 11 : index
      %238 = memref.load %arg2[%c11] : memref<98xf32, #tpu.memory_space<smem>>
      %c0_154 = arith.constant 0 : index
      %c1_155 = arith.constant 1 : index
      %c0_156 = arith.constant 0 : index
      %239 = vector.load %arg6[%c0_154, %c1_155, %c0_156] : memref<2x22x16xf32, #tpu.memory_space<vmem>>, vector<1x16x16xf32>
      %240 = vector.shape_cast %239 : vector<1x16x16xf32> to vector<16x16xf32>
      %241 = vector.broadcast %238 : f32 to vector<16x16xf32>
      %242 = arith.mulf %241, %240 : vector<16x16xf32>
      %243 = arith.addf %237, %242 : vector<16x16xf32>
      %c18 = arith.constant 18 : index
      %244 = memref.load %arg2[%c18] : memref<98xf32, #tpu.memory_space<smem>>
      %c0_157 = arith.constant 0 : index
      %c2_158 = arith.constant 2 : index
      %c0_159 = arith.constant 0 : index
      %245 = vector.load %arg6[%c0_157, %c2_158, %c0_159] : memref<2x22x16xf32, #tpu.memory_space<vmem>>, vector<1x16x16xf32>
      %246 = vector.shape_cast %245 : vector<1x16x16xf32> to vector<16x16xf32>
      %247 = vector.broadcast %244 : f32 to vector<16x16xf32>
      %248 = arith.mulf %247, %246 : vector<16x16xf32>
      %249 = arith.addf %243, %248 : vector<16x16xf32>
      %c25 = arith.constant 25 : index
      %250 = memref.load %arg2[%c25] : memref<98xf32, #tpu.memory_space<smem>>
      %c0_160 = arith.constant 0 : index
      %c3_161 = arith.constant 3 : index
      %c0_162 = arith.constant 0 : index
      %251 = vector.load %arg6[%c0_160, %c3_161, %c0_162] : memref<2x22x16xf32, #tpu.memory_space<vmem>>, vector<1x16x16xf32>
      %252 = vector.shape_cast %251 : vector<1x16x16xf32> to vector<16x16xf32>
      %253 = vector.broadcast %250 : f32 to vector<16x16xf32>
      %254 = arith.mulf %253, %252 : vector<16x16xf32>
      %255 = arith.addf %249, %254 : vector<16x16xf32>
      %c32 = arith.constant 32 : index
      %256 = memref.load %arg2[%c32] : memref<98xf32, #tpu.memory_space<smem>>
      %c0_163 = arith.constant 0 : index
      %c4_164 = arith.constant 4 : index
      %c0_165 = arith.constant 0 : index
      %257 = vector.load %arg6[%c0_163, %c4_164, %c0_165] : memref<2x22x16xf32, #tpu.memory_space<vmem>>, vector<1x16x16xf32>
      %258 = vector.shape_cast %257 : vector<1x16x16xf32> to vector<16x16xf32>
      %259 = vector.broadcast %256 : f32 to vector<16x16xf32>
      %260 = arith.mulf %259, %258 : vector<16x16xf32>
      %261 = arith.addf %255, %260 : vector<16x16xf32>
      %c39 = arith.constant 39 : index
      %262 = memref.load %arg2[%c39] : memref<98xf32, #tpu.memory_space<smem>>
      %c0_166 = arith.constant 0 : index
      %c5_167 = arith.constant 5 : index
      %c0_168 = arith.constant 0 : index
      %263 = vector.load %arg6[%c0_166, %c5_167, %c0_168] : memref<2x22x16xf32, #tpu.memory_space<vmem>>, vector<1x16x16xf32>
      %264 = vector.shape_cast %263 : vector<1x16x16xf32> to vector<16x16xf32>
      %265 = vector.broadcast %262 : f32 to vector<16x16xf32>
      %266 = arith.mulf %265, %264 : vector<16x16xf32>
      %267 = arith.addf %261, %266 : vector<16x16xf32>
      %c46 = arith.constant 46 : index
      %268 = memref.load %arg2[%c46] : memref<98xf32, #tpu.memory_space<smem>>
      %c0_169 = arith.constant 0 : index
      %c6_170 = arith.constant 6 : index
      %c0_171 = arith.constant 0 : index
      %269 = vector.load %arg6[%c0_169, %c6_170, %c0_171] : memref<2x22x16xf32, #tpu.memory_space<vmem>>, vector<1x16x16xf32>
      %270 = vector.shape_cast %269 : vector<1x16x16xf32> to vector<16x16xf32>
      %271 = vector.broadcast %268 : f32 to vector<16x16xf32>
      %272 = arith.mulf %271, %270 : vector<16x16xf32>
      %273 = arith.addf %267, %272 : vector<16x16xf32>
      %c0_172 = arith.constant 0 : index
      %c0_173 = arith.constant 0 : index
      %c5_174 = arith.constant 5 : index
      %274 = vector.load %arg5[%c0_172, %c0_173, %c5_174] : memref<2x22x22xf32, #tpu.memory_space<vmem>>, vector<1x22x16xf32>
      %275 = vector.shape_cast %274 : vector<1x22x16xf32> to vector<22x16xf32>
      %c1_175 = arith.constant 1 : index
      %c0_176 = arith.constant 0 : index
      %c0_177 = arith.constant 0 : index
      %276 = vector.load %arg6[%c1_175, %c0_176, %c0_177] : memref<2x22x16xf32, #tpu.memory_space<vmem>>, vector<1x22x16xf32>
      %277 = vector.shape_cast %276 : vector<1x22x16xf32> to vector<22x16xf32>
      %278 = vector.shape_cast %275 : vector<22x16xf32> to vector<1x22x16xf32>
      tpu.vector_store %arg6[%c1_175, %c0_176, %c0_177], %278 {strides = array<i32>} : memref<2x22x16xf32, #tpu.memory_space<vmem>>, vector<1x22x16xf32>,
      %c5_178 = arith.constant 5 : index
      %279 = memref.load %arg2[%c5_178] : memref<98xf32, #tpu.memory_space<smem>>
      %c1_179 = arith.constant 1 : index
      %c0_180 = arith.constant 0 : index
      %c0_181 = arith.constant 0 : index
      %280 = vector.load %arg6[%c1_179, %c0_180, %c0_181] : memref<2x22x16xf32, #tpu.memory_space<vmem>>, vector<1x16x16xf32>
      %281 = vector.shape_cast %280 : vector<1x16x16xf32> to vector<16x16xf32>
      %282 = vector.broadcast %279 : f32 to vector<16x16xf32>
      %283 = arith.mulf %282, %281 : vector<16x16xf32>
      %284 = arith.addf %132, %283 : vector<16x16xf32>
      %c12 = arith.constant 12 : index
      %285 = memref.load %arg2[%c12] : memref<98xf32, #tpu.memory_space<smem>>
      %c1_182 = arith.constant 1 : index
      %c1_183 = arith.constant 1 : index
      %c0_184 = arith.constant 0 : index
      %286 = vector.load %arg6[%c1_182, %c1_183, %c0_184] : memref<2x22x16xf32, #tpu.memory_space<vmem>>, vector<1x16x16xf32>
      %287 = vector.shape_cast %286 : vector<1x16x16xf32> to vector<16x16xf32>
      %288 = vector.broadcast %285 : f32 to vector<16x16xf32>
      %289 = arith.mulf %288, %287 : vector<16x16xf32>
      %290 = arith.addf %284, %289 : vector<16x16xf32>
      %c19_185 = arith.constant 19 : index
      %291 = memref.load %arg2[%c19_185] : memref<98xf32, #tpu.memory_space<smem>>
      %c1_186 = arith.constant 1 : index
      %c2_187 = arith.constant 2 : index
      %c0_188 = arith.constant 0 : index
      %292 = vector.load %arg6[%c1_186, %c2_187, %c0_188] : memref<2x22x16xf32, #tpu.memory_space<vmem>>, vector<1x16x16xf32>
      %293 = vector.shape_cast %292 : vector<1x16x16xf32> to vector<16x16xf32>
      %294 = vector.broadcast %291 : f32 to vector<16x16xf32>
      %295 = arith.mulf %294, %293 : vector<16x16xf32>
      %296 = arith.addf %290, %295 : vector<16x16xf32>
      %c26 = arith.constant 26 : index
      %297 = memref.load %arg2[%c26] : memref<98xf32, #tpu.memory_space<smem>>
      %c1_189 = arith.constant 1 : index
      %c3_190 = arith.constant 3 : index
      %c0_191 = arith.constant 0 : index
      %298 = vector.load %arg6[%c1_189, %c3_190, %c0_191] : memref<2x22x16xf32, #tpu.memory_space<vmem>>, vector<1x16x16xf32>
      %299 = vector.shape_cast %298 : vector<1x16x16xf32> to vector<16x16xf32>
      %300 = vector.broadcast %297 : f32 to vector<16x16xf32>
      %301 = arith.mulf %300, %299 : vector<16x16xf32>
      %302 = arith.addf %296, %301 : vector<16x16xf32>
      %c33 = arith.constant 33 : index
      %303 = memref.load %arg2[%c33] : memref<98xf32, #tpu.memory_space<smem>>
      %c1_192 = arith.constant 1 : index
      %c4_193 = arith.constant 4 : index
      %c0_194 = arith.constant 0 : index
      %304 = vector.load %arg6[%c1_192, %c4_193, %c0_194] : memref<2x22x16xf32, #tpu.memory_space<vmem>>, vector<1x16x16xf32>
      %305 = vector.shape_cast %304 : vector<1x16x16xf32> to vector<16x16xf32>
      %306 = vector.broadcast %303 : f32 to vector<16x16xf32>
      %307 = arith.mulf %306, %305 : vector<16x16xf32>
      %308 = arith.addf %302, %307 : vector<16x16xf32>
      %c40 = arith.constant 40 : index
      %309 = memref.load %arg2[%c40] : memref<98xf32, #tpu.memory_space<smem>>
      %c1_195 = arith.constant 1 : index
      %c5_196 = arith.constant 5 : index
      %c0_197 = arith.constant 0 : index
      %310 = vector.load %arg6[%c1_195, %c5_196, %c0_197] : memref<2x22x16xf32, #tpu.memory_space<vmem>>, vector<1x16x16xf32>
      %311 = vector.shape_cast %310 : vector<1x16x16xf32> to vector<16x16xf32>
      %312 = vector.broadcast %309 : f32 to vector<16x16xf32>
      %313 = arith.mulf %312, %311 : vector<16x16xf32>
      %314 = arith.addf %308, %313 : vector<16x16xf32>
      %c47 = arith.constant 47 : index
      %315 = memref.load %arg2[%c47] : memref<98xf32, #tpu.memory_space<smem>>
      %c1_198 = arith.constant 1 : index
      %c6_199 = arith.constant 6 : index
      %c0_200 = arith.constant 0 : index
      %316 = vector.load %arg6[%c1_198, %c6_199, %c0_200] : memref<2x22x16xf32, #tpu.memory_space<vmem>>, vector<1x16x16xf32>
      %317 = vector.shape_cast %316 : vector<1x16x16xf32> to vector<16x16xf32>
      %318 = vector.broadcast %315 : f32 to vector<16x16xf32>
      %319 = arith.mulf %318, %317 : vector<16x16xf32>
      %320 = arith.addf %314, %319 : vector<16x16xf32>
      %c0_201 = arith.constant 0 : index
      %c0_202 = arith.constant 0 : index
      %c6_203 = arith.constant 6 : index
      %321 = vector.load %arg5[%c0_201, %c0_202, %c6_203] : memref<2x22x22xf32, #tpu.memory_space<vmem>>, vector<1x22x16xf32>
      %322 = vector.shape_cast %321 : vector<1x22x16xf32> to vector<22x16xf32>
      %c0_204 = arith.constant 0 : index
      %c0_205 = arith.constant 0 : index
      %c0_206 = arith.constant 0 : index
      %323 = vector.load %arg6[%c0_204, %c0_205, %c0_206] : memref<2x22x16xf32, #tpu.memory_space<vmem>>, vector<1x22x16xf32>
      %324 = vector.shape_cast %323 : vector<1x22x16xf32> to vector<22x16xf32>
      %325 = vector.shape_cast %322 : vector<22x16xf32> to vector<1x22x16xf32>
      tpu.vector_store %arg6[%c0_204, %c0_205, %c0_206], %325 {strides = array<i32>} : memref<2x22x16xf32, #tpu.memory_space<vmem>>, vector<1x22x16xf32>,
      %c6_207 = arith.constant 6 : index
      %326 = memref.load %arg2[%c6_207] : memref<98xf32, #tpu.memory_space<smem>>
      %c0_208 = arith.constant 0 : index
      %c0_209 = arith.constant 0 : index
      %c0_210 = arith.constant 0 : index
      %327 = vector.load %arg6[%c0_208, %c0_209, %c0_210] : memref<2x22x16xf32, #tpu.memory_space<vmem>>, vector<1x16x16xf32>
      %328 = vector.shape_cast %327 : vector<1x16x16xf32> to vector<16x16xf32>
      %329 = vector.broadcast %326 : f32 to vector<16x16xf32>
      %330 = arith.mulf %329, %328 : vector<16x16xf32>
      %331 = arith.addf %179, %330 : vector<16x16xf32>
      %c13 = arith.constant 13 : index
      %332 = memref.load %arg2[%c13] : memref<98xf32, #tpu.memory_space<smem>>
      %c0_211 = arith.constant 0 : index
      %c1_212 = arith.constant 1 : index
      %c0_213 = arith.constant 0 : index
      %333 = vector.load %arg6[%c0_211, %c1_212, %c0_213] : memref<2x22x16xf32, #tpu.memory_space<vmem>>, vector<1x16x16xf32>
      %334 = vector.shape_cast %333 : vector<1x16x16xf32> to vector<16x16xf32>
      %335 = vector.broadcast %332 : f32 to vector<16x16xf32>
      %336 = arith.mulf %335, %334 : vector<16x16xf32>
      %337 = arith.addf %331, %336 : vector<16x16xf32>
      %c20 = arith.constant 20 : index
      %338 = memref.load %arg2[%c20] : memref<98xf32, #tpu.memory_space<smem>>
      %c0_214 = arith.constant 0 : index
      %c2_215 = arith.constant 2 : index
      %c0_216 = arith.constant 0 : index
      %339 = vector.load %arg6[%c0_214, %c2_215, %c0_216] : memref<2x22x16xf32, #tpu.memory_space<vmem>>, vector<1x16x16xf32>
      %340 = vector.shape_cast %339 : vector<1x16x16xf32> to vector<16x16xf32>
      %341 = vector.broadcast %338 : f32 to vector<16x16xf32>
      %342 = arith.mulf %341, %340 : vector<16x16xf32>
      %343 = arith.addf %337, %342 : vector<16x16xf32>
      %c27 = arith.constant 27 : index
      %344 = memref.load %arg2[%c27] : memref<98xf32, #tpu.memory_space<smem>>
      %c0_217 = arith.constant 0 : index
      %c3_218 = arith.constant 3 : index
      %c0_219 = arith.constant 0 : index
      %345 = vector.load %arg6[%c0_217, %c3_218, %c0_219] : memref<2x22x16xf32, #tpu.memory_space<vmem>>, vector<1x16x16xf32>
      %346 = vector.shape_cast %345 : vector<1x16x16xf32> to vector<16x16xf32>
      %347 = vector.broadcast %344 : f32 to vector<16x16xf32>
      %348 = arith.mulf %347, %346 : vector<16x16xf32>
      %349 = arith.addf %343, %348 : vector<16x16xf32>
      %c34 = arith.constant 34 : index
      %350 = memref.load %arg2[%c34] : memref<98xf32, #tpu.memory_space<smem>>
      %c0_220 = arith.constant 0 : index
      %c4_221 = arith.constant 4 : index
      %c0_222 = arith.constant 0 : index
      %351 = vector.load %arg6[%c0_220, %c4_221, %c0_222] : memref<2x22x16xf32, #tpu.memory_space<vmem>>, vector<1x16x16xf32>
      %352 = vector.shape_cast %351 : vector<1x16x16xf32> to vector<16x16xf32>
      %353 = vector.broadcast %350 : f32 to vector<16x16xf32>
      %354 = arith.mulf %353, %352 : vector<16x16xf32>
      %355 = arith.addf %349, %354 : vector<16x16xf32>
      %c41 = arith.constant 41 : index
      %356 = memref.load %arg2[%c41] : memref<98xf32, #tpu.memory_space<smem>>
      %c0_223 = arith.constant 0 : index
      %c5_224 = arith.constant 5 : index
      %c0_225 = arith.constant 0 : index
      %357 = vector.load %arg6[%c0_223, %c5_224, %c0_225] : memref<2x22x16xf32, #tpu.memory_space<vmem>>, vector<1x16x16xf32>
      %358 = vector.shape_cast %357 : vector<1x16x16xf32> to vector<16x16xf32>
      %359 = vector.broadcast %356 : f32 to vector<16x16xf32>
      %360 = arith.mulf %359, %358 : vector<16x16xf32>
      %361 = arith.addf %355, %360 : vector<16x16xf32>
      %c48 = arith.constant 48 : index
      %362 = memref.load %arg2[%c48] : memref<98xf32, #tpu.memory_space<smem>>
      %c0_226 = arith.constant 0 : index
      %c6_227 = arith.constant 6 : index
      %c0_228 = arith.constant 0 : index
      %363 = vector.load %arg6[%c0_226, %c6_227, %c0_228] : memref<2x22x16xf32, #tpu.memory_space<vmem>>, vector<1x16x16xf32>
      %364 = vector.shape_cast %363 : vector<1x16x16xf32> to vector<16x16xf32>
      %365 = vector.broadcast %362 : f32 to vector<16x16xf32>
      %366 = arith.mulf %365, %364 : vector<16x16xf32>
      %367 = arith.addf %361, %366 : vector<16x16xf32>
      %c1_229 = arith.constant 1 : index
      %c0_230 = arith.constant 0 : index
      %c0_231 = arith.constant 0 : index
      %368 = vector.load %arg5[%c1_229, %c0_230, %c0_231] : memref<2x22x22xf32, #tpu.memory_space<vmem>>, vector<1x22x16xf32>
      %369 = vector.shape_cast %368 : vector<1x22x16xf32> to vector<22x16xf32>
      %c1_232 = arith.constant 1 : index
      %c0_233 = arith.constant 0 : index
      %c0_234 = arith.constant 0 : index
      %370 = vector.load %arg6[%c1_232, %c0_233, %c0_234] : memref<2x22x16xf32, #tpu.memory_space<vmem>>, vector<1x22x16xf32>
      %371 = vector.shape_cast %370 : vector<1x22x16xf32> to vector<22x16xf32>
      %372 = vector.shape_cast %369 : vector<22x16xf32> to vector<1x22x16xf32>
      tpu.vector_store %arg6[%c1_232, %c0_233, %c0_234], %372 {strides = array<i32>} : memref<2x22x16xf32, #tpu.memory_space<vmem>>, vector<1x22x16xf32>,
      %c49 = arith.constant 49 : index
      %373 = memref.load %arg2[%c49] : memref<98xf32, #tpu.memory_space<smem>>
      %c1_235 = arith.constant 1 : index
      %c0_236 = arith.constant 0 : index
      %c0_237 = arith.constant 0 : index
      %374 = vector.load %arg6[%c1_235, %c0_236, %c0_237] : memref<2x22x16xf32, #tpu.memory_space<vmem>>, vector<1x16x16xf32>
      %375 = vector.shape_cast %374 : vector<1x16x16xf32> to vector<16x16xf32>
      %376 = vector.broadcast %373 : f32 to vector<16x16xf32>
      %377 = arith.mulf %376, %375 : vector<16x16xf32>
      %378 = arith.addf %226, %377 : vector<16x16xf32>
      %c56 = arith.constant 56 : index
      %379 = memref.load %arg2[%c56] : memref<98xf32, #tpu.memory_space<smem>>
      %c1_238 = arith.constant 1 : index
      %c1_239 = arith.constant 1 : index
      %c0_240 = arith.constant 0 : index
      %380 = vector.load %arg6[%c1_238, %c1_239, %c0_240] : memref<2x22x16xf32, #tpu.memory_space<vmem>>, vector<1x16x16xf32>
      %381 = vector.shape_cast %380 : vector<1x16x16xf32> to vector<16x16xf32>
      %382 = vector.broadcast %379 : f32 to vector<16x16xf32>
      %383 = arith.mulf %382, %381 : vector<16x16xf32>
      %384 = arith.addf %378, %383 : vector<16x16xf32>
      %c63 = arith.constant 63 : index
      %385 = memref.load %arg2[%c63] : memref<98xf32, #tpu.memory_space<smem>>
      %c1_241 = arith.constant 1 : index
      %c2_242 = arith.constant 2 : index
      %c0_243 = arith.constant 0 : index
      %386 = vector.load %arg6[%c1_241, %c2_242, %c0_243] : memref<2x22x16xf32, #tpu.memory_space<vmem>>, vector<1x16x16xf32>
      %387 = vector.shape_cast %386 : vector<1x16x16xf32> to vector<16x16xf32>
      %388 = vector.broadcast %385 : f32 to vector<16x16xf32>
      %389 = arith.mulf %388, %387 : vector<16x16xf32>
      %390 = arith.addf %384, %389 : vector<16x16xf32>
      %c70 = arith.constant 70 : index
      %391 = memref.load %arg2[%c70] : memref<98xf32, #tpu.memory_space<smem>>
      %c1_244 = arith.constant 1 : index
      %c3_245 = arith.constant 3 : index
      %c0_246 = arith.constant 0 : index
      %392 = vector.load %arg6[%c1_244, %c3_245, %c0_246] : memref<2x22x16xf32, #tpu.memory_space<vmem>>, vector<1x16x16xf32>
      %393 = vector.shape_cast %392 : vector<1x16x16xf32> to vector<16x16xf32>
      %394 = vector.broadcast %391 : f32 to vector<16x16xf32>
      %395 = arith.mulf %394, %393 : vector<16x16xf32>
      %396 = arith.addf %390, %395 : vector<16x16xf32>
      %c77 = arith.constant 77 : index
      %397 = memref.load %arg2[%c77] : memref<98xf32, #tpu.memory_space<smem>>
      %c1_247 = arith.constant 1 : index
      %c4_248 = arith.constant 4 : index
      %c0_249 = arith.constant 0 : index
      %398 = vector.load %arg6[%c1_247, %c4_248, %c0_249] : memref<2x22x16xf32, #tpu.memory_space<vmem>>, vector<1x16x16xf32>
      %399 = vector.shape_cast %398 : vector<1x16x16xf32> to vector<16x16xf32>
      %400 = vector.broadcast %397 : f32 to vector<16x16xf32>
      %401 = arith.mulf %400, %399 : vector<16x16xf32>
      %402 = arith.addf %396, %401 : vector<16x16xf32>
      %c84 = arith.constant 84 : index
      %403 = memref.load %arg2[%c84] : memref<98xf32, #tpu.memory_space<smem>>
      %c1_250 = arith.constant 1 : index
      %c5_251 = arith.constant 5 : index
      %c0_252 = arith.constant 0 : index
      %404 = vector.load %arg6[%c1_250, %c5_251, %c0_252] : memref<2x22x16xf32, #tpu.memory_space<vmem>>, vector<1x16x16xf32>
      %405 = vector.shape_cast %404 : vector<1x16x16xf32> to vector<16x16xf32>
      %406 = vector.broadcast %403 : f32 to vector<16x16xf32>
      %407 = arith.mulf %406, %405 : vector<16x16xf32>
      %408 = arith.addf %402, %407 : vector<16x16xf32>
      %c91 = arith.constant 91 : index
      %409 = memref.load %arg2[%c91] : memref<98xf32, #tpu.memory_space<smem>>
      %c1_253 = arith.constant 1 : index
      %c6_254 = arith.constant 6 : index
      %c0_255 = arith.constant 0 : index
      %410 = vector.load %arg6[%c1_253, %c6_254, %c0_255] : memref<2x22x16xf32, #tpu.memory_space<vmem>>, vector<1x16x16xf32>
      %411 = vector.shape_cast %410 : vector<1x16x16xf32> to vector<16x16xf32>
      %412 = vector.broadcast %409 : f32 to vector<16x16xf32>
      %413 = arith.mulf %412, %411 : vector<16x16xf32>
      %414 = arith.addf %408, %413 : vector<16x16xf32>
      %c1_256 = arith.constant 1 : index
      %c0_257 = arith.constant 0 : index
      %c1_258 = arith.constant 1 : index
      %415 = vector.load %arg5[%c1_256, %c0_257, %c1_258] : memref<2x22x22xf32, #tpu.memory_space<vmem>>, vector<1x22x16xf32>
      %416 = vector.shape_cast %415 : vector<1x22x16xf32> to vector<22x16xf32>
      %c0_259 = arith.constant 0 : index
      %c0_260 = arith.constant 0 : index
      %c0_261 = arith.constant 0 : index
      %417 = vector.load %arg6[%c0_259, %c0_260, %c0_261] : memref<2x22x16xf32, #tpu.memory_space<vmem>>, vector<1x22x16xf32>
      %418 = vector.shape_cast %417 : vector<1x22x16xf32> to vector<22x16xf32>
      %419 = vector.shape_cast %416 : vector<22x16xf32> to vector<1x22x16xf32>
      tpu.vector_store %arg6[%c0_259, %c0_260, %c0_261], %419 {strides = array<i32>} : memref<2x22x16xf32, #tpu.memory_space<vmem>>, vector<1x22x16xf32>,
      %c50 = arith.constant 50 : index
      %420 = memref.load %arg2[%c50] : memref<98xf32, #tpu.memory_space<smem>>
      %c0_262 = arith.constant 0 : index
      %c0_263 = arith.constant 0 : index
      %c0_264 = arith.constant 0 : index
      %421 = vector.load %arg6[%c0_262, %c0_263, %c0_264] : memref<2x22x16xf32, #tpu.memory_space<vmem>>, vector<1x16x16xf32>
      %422 = vector.shape_cast %421 : vector<1x16x16xf32> to vector<16x16xf32>
      %423 = vector.broadcast %420 : f32 to vector<16x16xf32>
      %424 = arith.mulf %423, %422 : vector<16x16xf32>
      %425 = arith.addf %273, %424 : vector<16x16xf32>
      %c57 = arith.constant 57 : index
      %426 = memref.load %arg2[%c57] : memref<98xf32, #tpu.memory_space<smem>>
      %c0_265 = arith.constant 0 : index
      %c1_266 = arith.constant 1 : index
      %c0_267 = arith.constant 0 : index
      %427 = vector.load %arg6[%c0_265, %c1_266, %c0_267] : memref<2x22x16xf32, #tpu.memory_space<vmem>>, vector<1x16x16xf32>
      %428 = vector.shape_cast %427 : vector<1x16x16xf32> to vector<16x16xf32>
      %429 = vector.broadcast %426 : f32 to vector<16x16xf32>
      %430 = arith.mulf %429, %428 : vector<16x16xf32>
      %431 = arith.addf %425, %430 : vector<16x16xf32>
      %c64 = arith.constant 64 : index
      %432 = memref.load %arg2[%c64] : memref<98xf32, #tpu.memory_space<smem>>
      %c0_268 = arith.constant 0 : index
      %c2_269 = arith.constant 2 : index
      %c0_270 = arith.constant 0 : index
      %433 = vector.load %arg6[%c0_268, %c2_269, %c0_270] : memref<2x22x16xf32, #tpu.memory_space<vmem>>, vector<1x16x16xf32>
      %434 = vector.shape_cast %433 : vector<1x16x16xf32> to vector<16x16xf32>
      %435 = vector.broadcast %432 : f32 to vector<16x16xf32>
      %436 = arith.mulf %435, %434 : vector<16x16xf32>
      %437 = arith.addf %431, %436 : vector<16x16xf32>
      %c71 = arith.constant 71 : index
      %438 = memref.load %arg2[%c71] : memref<98xf32, #tpu.memory_space<smem>>
      %c0_271 = arith.constant 0 : index
      %c3_272 = arith.constant 3 : index
      %c0_273 = arith.constant 0 : index
      %439 = vector.load %arg6[%c0_271, %c3_272, %c0_273] : memref<2x22x16xf32, #tpu.memory_space<vmem>>, vector<1x16x16xf32>
      %440 = vector.shape_cast %439 : vector<1x16x16xf32> to vector<16x16xf32>
      %441 = vector.broadcast %438 : f32 to vector<16x16xf32>
      %442 = arith.mulf %441, %440 : vector<16x16xf32>
      %443 = arith.addf %437, %442 : vector<16x16xf32>
      %c78 = arith.constant 78 : index
      %444 = memref.load %arg2[%c78] : memref<98xf32, #tpu.memory_space<smem>>
      %c0_274 = arith.constant 0 : index
      %c4_275 = arith.constant 4 : index
      %c0_276 = arith.constant 0 : index
      %445 = vector.load %arg6[%c0_274, %c4_275, %c0_276] : memref<2x22x16xf32, #tpu.memory_space<vmem>>, vector<1x16x16xf32>
      %446 = vector.shape_cast %445 : vector<1x16x16xf32> to vector<16x16xf32>
      %447 = vector.broadcast %444 : f32 to vector<16x16xf32>
      %448 = arith.mulf %447, %446 : vector<16x16xf32>
      %449 = arith.addf %443, %448 : vector<16x16xf32>
      %c85 = arith.constant 85 : index
      %450 = memref.load %arg2[%c85] : memref<98xf32, #tpu.memory_space<smem>>
      %c0_277 = arith.constant 0 : index
      %c5_278 = arith.constant 5 : index
      %c0_279 = arith.constant 0 : index
      %451 = vector.load %arg6[%c0_277, %c5_278, %c0_279] : memref<2x22x16xf32, #tpu.memory_space<vmem>>, vector<1x16x16xf32>
      %452 = vector.shape_cast %451 : vector<1x16x16xf32> to vector<16x16xf32>
      %453 = vector.broadcast %450 : f32 to vector<16x16xf32>
      %454 = arith.mulf %453, %452 : vector<16x16xf32>
      %455 = arith.addf %449, %454 : vector<16x16xf32>
      %c92 = arith.constant 92 : index
      %456 = memref.load %arg2[%c92] : memref<98xf32, #tpu.memory_space<smem>>
      %c0_280 = arith.constant 0 : index
      %c6_281 = arith.constant 6 : index
      %c0_282 = arith.constant 0 : index
      %457 = vector.load %arg6[%c0_280, %c6_281, %c0_282] : memref<2x22x16xf32, #tpu.memory_space<vmem>>, vector<1x16x16xf32>
      %458 = vector.shape_cast %457 : vector<1x16x16xf32> to vector<16x16xf32>
      %459 = vector.broadcast %456 : f32 to vector<16x16xf32>
      %460 = arith.mulf %459, %458 : vector<16x16xf32>
      %461 = arith.addf %455, %460 : vector<16x16xf32>
      %c1_283 = arith.constant 1 : index
      %c0_284 = arith.constant 0 : index
      %c2_285 = arith.constant 2 : index
      %462 = vector.load %arg5[%c1_283, %c0_284, %c2_285] : memref<2x22x22xf32, #tpu.memory_space<vmem>>, vector<1x22x16xf32>
      %463 = vector.shape_cast %462 : vector<1x22x16xf32> to vector<22x16xf32>
      %c1_286 = arith.constant 1 : index
      %c0_287 = arith.constant 0 : index
      %c0_288 = arith.constant 0 : index
      %464 = vector.load %arg6[%c1_286, %c0_287, %c0_288] : memref<2x22x16xf32, #tpu.memory_space<vmem>>, vector<1x22x16xf32>
      %465 = vector.shape_cast %464 : vector<1x22x16xf32> to vector<22x16xf32>
      %466 = vector.shape_cast %463 : vector<22x16xf32> to vector<1x22x16xf32>
      tpu.vector_store %arg6[%c1_286, %c0_287, %c0_288], %466 {strides = array<i32>} : memref<2x22x16xf32, #tpu.memory_space<vmem>>, vector<1x22x16xf32>,
      %c51 = arith.constant 51 : index
      %467 = memref.load %arg2[%c51] : memref<98xf32, #tpu.memory_space<smem>>
      %c1_289 = arith.constant 1 : index
      %c0_290 = arith.constant 0 : index
      %c0_291 = arith.constant 0 : index
      %468 = vector.load %arg6[%c1_289, %c0_290, %c0_291] : memref<2x22x16xf32, #tpu.memory_space<vmem>>, vector<1x16x16xf32>
      %469 = vector.shape_cast %468 : vector<1x16x16xf32> to vector<16x16xf32>
      %470 = vector.broadcast %467 : f32 to vector<16x16xf32>
      %471 = arith.mulf %470, %469 : vector<16x16xf32>
      %472 = arith.addf %320, %471 : vector<16x16xf32>
      %c58 = arith.constant 58 : index
      %473 = memref.load %arg2[%c58] : memref<98xf32, #tpu.memory_space<smem>>
      %c1_292 = arith.constant 1 : index
      %c1_293 = arith.constant 1 : index
      %c0_294 = arith.constant 0 : index
      %474 = vector.load %arg6[%c1_292, %c1_293, %c0_294] : memref<2x22x16xf32, #tpu.memory_space<vmem>>, vector<1x16x16xf32>
      %475 = vector.shape_cast %474 : vector<1x16x16xf32> to vector<16x16xf32>
      %476 = vector.broadcast %473 : f32 to vector<16x16xf32>
      %477 = arith.mulf %476, %475 : vector<16x16xf32>
      %478 = arith.addf %472, %477 : vector<16x16xf32>
      %c65 = arith.constant 65 : index
      %479 = memref.load %arg2[%c65] : memref<98xf32, #tpu.memory_space<smem>>
      %c1_295 = arith.constant 1 : index
      %c2_296 = arith.constant 2 : index
      %c0_297 = arith.constant 0 : index
      %480 = vector.load %arg6[%c1_295, %c2_296, %c0_297] : memref<2x22x16xf32, #tpu.memory_space<vmem>>, vector<1x16x16xf32>
      %481 = vector.shape_cast %480 : vector<1x16x16xf32> to vector<16x16xf32>
      %482 = vector.broadcast %479 : f32 to vector<16x16xf32>
      %483 = arith.mulf %482, %481 : vector<16x16xf32>
      %484 = arith.addf %478, %483 : vector<16x16xf32>
      %c72 = arith.constant 72 : index
      %485 = memref.load %arg2[%c72] : memref<98xf32, #tpu.memory_space<smem>>
      %c1_298 = arith.constant 1 : index
      %c3_299 = arith.constant 3 : index
      %c0_300 = arith.constant 0 : index
      %486 = vector.load %arg6[%c1_298, %c3_299, %c0_300] : memref<2x22x16xf32, #tpu.memory_space<vmem>>, vector<1x16x16xf32>
      %487 = vector.shape_cast %486 : vector<1x16x16xf32> to vector<16x16xf32>
      %488 = vector.broadcast %485 : f32 to vector<16x16xf32>
      %489 = arith.mulf %488, %487 : vector<16x16xf32>
      %490 = arith.addf %484, %489 : vector<16x16xf32>
      %c79 = arith.constant 79 : index
      %491 = memref.load %arg2[%c79] : memref<98xf32, #tpu.memory_space<smem>>
      %c1_301 = arith.constant 1 : index
      %c4_302 = arith.constant 4 : index
      %c0_303 = arith.constant 0 : index
      %492 = vector.load %arg6[%c1_301, %c4_302, %c0_303] : memref<2x22x16xf32, #tpu.memory_space<vmem>>, vector<1x16x16xf32>
      %493 = vector.shape_cast %492 : vector<1x16x16xf32> to vector<16x16xf32>
      %494 = vector.broadcast %491 : f32 to vector<16x16xf32>
      %495 = arith.mulf %494, %493 : vector<16x16xf32>
      %496 = arith.addf %490, %495 : vector<16x16xf32>
      %c86 = arith.constant 86 : index
      %497 = memref.load %arg2[%c86] : memref<98xf32, #tpu.memory_space<smem>>
      %c1_304 = arith.constant 1 : index
      %c5_305 = arith.constant 5 : index
      %c0_306 = arith.constant 0 : index
      %498 = vector.load %arg6[%c1_304, %c5_305, %c0_306] : memref<2x22x16xf32, #tpu.memory_space<vmem>>, vector<1x16x16xf32>
      %499 = vector.shape_cast %498 : vector<1x16x16xf32> to vector<16x16xf32>
      %500 = vector.broadcast %497 : f32 to vector<16x16xf32>
      %501 = arith.mulf %500, %499 : vector<16x16xf32>
      %502 = arith.addf %496, %501 : vector<16x16xf32>
      %c93 = arith.constant 93 : index
      %503 = memref.load %arg2[%c93] : memref<98xf32, #tpu.memory_space<smem>>
      %c1_307 = arith.constant 1 : index
      %c6_308 = arith.constant 6 : index
      %c0_309 = arith.constant 0 : index
      %504 = vector.load %arg6[%c1_307, %c6_308, %c0_309] : memref<2x22x16xf32, #tpu.memory_space<vmem>>, vector<1x16x16xf32>
      %505 = vector.shape_cast %504 : vector<1x16x16xf32> to vector<16x16xf32>
      %506 = vector.broadcast %503 : f32 to vector<16x16xf32>
      %507 = arith.mulf %506, %505 : vector<16x16xf32>
      %508 = arith.addf %502, %507 : vector<16x16xf32>
      %c1_310 = arith.constant 1 : index
      %c0_311 = arith.constant 0 : index
      %c3_312 = arith.constant 3 : index
      %509 = vector.load %arg5[%c1_310, %c0_311, %c3_312] : memref<2x22x22xf32, #tpu.memory_space<vmem>>, vector<1x22x16xf32>
      %510 = vector.shape_cast %509 : vector<1x22x16xf32> to vector<22x16xf32>
      %c0_313 = arith.constant 0 : index
      %c0_314 = arith.constant 0 : index
      %c0_315 = arith.constant 0 : index
      %511 = vector.load %arg6[%c0_313, %c0_314, %c0_315] : memref<2x22x16xf32, #tpu.memory_space<vmem>>, vector<1x22x16xf32>
      %512 = vector.shape_cast %511 : vector<1x22x16xf32> to vector<22x16xf32>
      %513 = vector.shape_cast %510 : vector<22x16xf32> to vector<1x22x16xf32>
      tpu.vector_store %arg6[%c0_313, %c0_314, %c0_315], %513 {strides = array<i32>} : memref<2x22x16xf32, #tpu.memory_space<vmem>>, vector<1x22x16xf32>,
      %c52 = arith.constant 52 : index
      %514 = memref.load %arg2[%c52] : memref<98xf32, #tpu.memory_space<smem>>
      %c0_316 = arith.constant 0 : index
      %c0_317 = arith.constant 0 : index
      %c0_318 = arith.constant 0 : index
      %515 = vector.load %arg6[%c0_316, %c0_317, %c0_318] : memref<2x22x16xf32, #tpu.memory_space<vmem>>, vector<1x16x16xf32>
      %516 = vector.shape_cast %515 : vector<1x16x16xf32> to vector<16x16xf32>
      %517 = vector.broadcast %514 : f32 to vector<16x16xf32>
      %518 = arith.mulf %517, %516 : vector<16x16xf32>
      %519 = arith.addf %367, %518 : vector<16x16xf32>
      %c59 = arith.constant 59 : index
      %520 = memref.load %arg2[%c59] : memref<98xf32, #tpu.memory_space<smem>>
      %c0_319 = arith.constant 0 : index
      %c1_320 = arith.constant 1 : index
      %c0_321 = arith.constant 0 : index
      %521 = vector.load %arg6[%c0_319, %c1_320, %c0_321] : memref<2x22x16xf32, #tpu.memory_space<vmem>>, vector<1x16x16xf32>
      %522 = vector.shape_cast %521 : vector<1x16x16xf32> to vector<16x16xf32>
      %523 = vector.broadcast %520 : f32 to vector<16x16xf32>
      %524 = arith.mulf %523, %522 : vector<16x16xf32>
      %525 = arith.addf %519, %524 : vector<16x16xf32>
      %c66 = arith.constant 66 : index
      %526 = memref.load %arg2[%c66] : memref<98xf32, #tpu.memory_space<smem>>
      %c0_322 = arith.constant 0 : index
      %c2_323 = arith.constant 2 : index
      %c0_324 = arith.constant 0 : index
      %527 = vector.load %arg6[%c0_322, %c2_323, %c0_324] : memref<2x22x16xf32, #tpu.memory_space<vmem>>, vector<1x16x16xf32>
      %528 = vector.shape_cast %527 : vector<1x16x16xf32> to vector<16x16xf32>
      %529 = vector.broadcast %526 : f32 to vector<16x16xf32>
      %530 = arith.mulf %529, %528 : vector<16x16xf32>
      %531 = arith.addf %525, %530 : vector<16x16xf32>
      %c73 = arith.constant 73 : index
      %532 = memref.load %arg2[%c73] : memref<98xf32, #tpu.memory_space<smem>>
      %c0_325 = arith.constant 0 : index
      %c3_326 = arith.constant 3 : index
      %c0_327 = arith.constant 0 : index
      %533 = vector.load %arg6[%c0_325, %c3_326, %c0_327] : memref<2x22x16xf32, #tpu.memory_space<vmem>>, vector<1x16x16xf32>
      %534 = vector.shape_cast %533 : vector<1x16x16xf32> to vector<16x16xf32>
      %535 = vector.broadcast %532 : f32 to vector<16x16xf32>
      %536 = arith.mulf %535, %534 : vector<16x16xf32>
      %537 = arith.addf %531, %536 : vector<16x16xf32>
      %c80 = arith.constant 80 : index
      %538 = memref.load %arg2[%c80] : memref<98xf32, #tpu.memory_space<smem>>
      %c0_328 = arith.constant 0 : index
      %c4_329 = arith.constant 4 : index
      %c0_330 = arith.constant 0 : index
      %539 = vector.load %arg6[%c0_328, %c4_329, %c0_330] : memref<2x22x16xf32, #tpu.memory_space<vmem>>, vector<1x16x16xf32>
      %540 = vector.shape_cast %539 : vector<1x16x16xf32> to vector<16x16xf32>
      %541 = vector.broadcast %538 : f32 to vector<16x16xf32>
      %542 = arith.mulf %541, %540 : vector<16x16xf32>
      %543 = arith.addf %537, %542 : vector<16x16xf32>
      %c87 = arith.constant 87 : index
      %544 = memref.load %arg2[%c87] : memref<98xf32, #tpu.memory_space<smem>>
      %c0_331 = arith.constant 0 : index
      %c5_332 = arith.constant 5 : index
      %c0_333 = arith.constant 0 : index
      %545 = vector.load %arg6[%c0_331, %c5_332, %c0_333] : memref<2x22x16xf32, #tpu.memory_space<vmem>>, vector<1x16x16xf32>
      %546 = vector.shape_cast %545 : vector<1x16x16xf32> to vector<16x16xf32>
      %547 = vector.broadcast %544 : f32 to vector<16x16xf32>
      %548 = arith.mulf %547, %546 : vector<16x16xf32>
      %549 = arith.addf %543, %548 : vector<16x16xf32>
      %c94 = arith.constant 94 : index
      %550 = memref.load %arg2[%c94] : memref<98xf32, #tpu.memory_space<smem>>
      %c0_334 = arith.constant 0 : index
      %c6_335 = arith.constant 6 : index
      %c0_336 = arith.constant 0 : index
      %551 = vector.load %arg6[%c0_334, %c6_335, %c0_336] : memref<2x22x16xf32, #tpu.memory_space<vmem>>, vector<1x16x16xf32>
      %552 = vector.shape_cast %551 : vector<1x16x16xf32> to vector<16x16xf32>
      %553 = vector.broadcast %550 : f32 to vector<16x16xf32>
      %554 = arith.mulf %553, %552 : vector<16x16xf32>
      %555 = arith.addf %549, %554 : vector<16x16xf32>
      %c1_337 = arith.constant 1 : index
      %c0_338 = arith.constant 0 : index
      %c4_339 = arith.constant 4 : index
      %556 = vector.load %arg5[%c1_337, %c0_338, %c4_339] : memref<2x22x22xf32, #tpu.memory_space<vmem>>, vector<1x22x16xf32>
      %557 = vector.shape_cast %556 : vector<1x22x16xf32> to vector<22x16xf32>
      %c1_340 = arith.constant 1 : index
      %c0_341 = arith.constant 0 : index
      %c0_342 = arith.constant 0 : index
      %558 = vector.load %arg6[%c1_340, %c0_341, %c0_342] : memref<2x22x16xf32, #tpu.memory_space<vmem>>, vector<1x22x16xf32>
      %559 = vector.shape_cast %558 : vector<1x22x16xf32> to vector<22x16xf32>
      %560 = vector.shape_cast %557 : vector<22x16xf32> to vector<1x22x16xf32>
      tpu.vector_store %arg6[%c1_340, %c0_341, %c0_342], %560 {strides = array<i32>} : memref<2x22x16xf32, #tpu.memory_space<vmem>>, vector<1x22x16xf32>,
      %c53 = arith.constant 53 : index
      %561 = memref.load %arg2[%c53] : memref<98xf32, #tpu.memory_space<smem>>
      %c1_343 = arith.constant 1 : index
      %c0_344 = arith.constant 0 : index
      %c0_345 = arith.constant 0 : index
      %562 = vector.load %arg6[%c1_343, %c0_344, %c0_345] : memref<2x22x16xf32, #tpu.memory_space<vmem>>, vector<1x16x16xf32>
      %563 = vector.shape_cast %562 : vector<1x16x16xf32> to vector<16x16xf32>
      %564 = vector.broadcast %561 : f32 to vector<16x16xf32>
      %565 = arith.mulf %564, %563 : vector<16x16xf32>
      %566 = arith.addf %414, %565 : vector<16x16xf32>
      %c60 = arith.constant 60 : index
      %567 = memref.load %arg2[%c60] : memref<98xf32, #tpu.memory_space<smem>>
      %c1_346 = arith.constant 1 : index
      %c1_347 = arith.constant 1 : index
      %c0_348 = arith.constant 0 : index
      %568 = vector.load %arg6[%c1_346, %c1_347, %c0_348] : memref<2x22x16xf32, #tpu.memory_space<vmem>>, vector<1x16x16xf32>
      %569 = vector.shape_cast %568 : vector<1x16x16xf32> to vector<16x16xf32>
      %570 = vector.broadcast %567 : f32 to vector<16x16xf32>
      %571 = arith.mulf %570, %569 : vector<16x16xf32>
      %572 = arith.addf %566, %571 : vector<16x16xf32>
      %c67 = arith.constant 67 : index
      %573 = memref.load %arg2[%c67] : memref<98xf32, #tpu.memory_space<smem>>
      %c1_349 = arith.constant 1 : index
      %c2_350 = arith.constant 2 : index
      %c0_351 = arith.constant 0 : index
      %574 = vector.load %arg6[%c1_349, %c2_350, %c0_351] : memref<2x22x16xf32, #tpu.memory_space<vmem>>, vector<1x16x16xf32>
      %575 = vector.shape_cast %574 : vector<1x16x16xf32> to vector<16x16xf32>
      %576 = vector.broadcast %573 : f32 to vector<16x16xf32>
      %577 = arith.mulf %576, %575 : vector<16x16xf32>
      %578 = arith.addf %572, %577 : vector<16x16xf32>
      %c74 = arith.constant 74 : index
      %579 = memref.load %arg2[%c74] : memref<98xf32, #tpu.memory_space<smem>>
      %c1_352 = arith.constant 1 : index
      %c3_353 = arith.constant 3 : index
      %c0_354 = arith.constant 0 : index
      %580 = vector.load %arg6[%c1_352, %c3_353, %c0_354] : memref<2x22x16xf32, #tpu.memory_space<vmem>>, vector<1x16x16xf32>
      %581 = vector.shape_cast %580 : vector<1x16x16xf32> to vector<16x16xf32>
      %582 = vector.broadcast %579 : f32 to vector<16x16xf32>
      %583 = arith.mulf %582, %581 : vector<16x16xf32>
      %584 = arith.addf %578, %583 : vector<16x16xf32>
      %c81 = arith.constant 81 : index
      %585 = memref.load %arg2[%c81] : memref<98xf32, #tpu.memory_space<smem>>
      %c1_355 = arith.constant 1 : index
      %c4_356 = arith.constant 4 : index
      %c0_357 = arith.constant 0 : index
      %586 = vector.load %arg6[%c1_355, %c4_356, %c0_357] : memref<2x22x16xf32, #tpu.memory_space<vmem>>, vector<1x16x16xf32>
      %587 = vector.shape_cast %586 : vector<1x16x16xf32> to vector<16x16xf32>
      %588 = vector.broadcast %585 : f32 to vector<16x16xf32>
      %589 = arith.mulf %588, %587 : vector<16x16xf32>
      %590 = arith.addf %584, %589 : vector<16x16xf32>
      %c88 = arith.constant 88 : index
      %591 = memref.load %arg2[%c88] : memref<98xf32, #tpu.memory_space<smem>>
      %c1_358 = arith.constant 1 : index
      %c5_359 = arith.constant 5 : index
      %c0_360 = arith.constant 0 : index
      %592 = vector.load %arg6[%c1_358, %c5_359, %c0_360] : memref<2x22x16xf32, #tpu.memory_space<vmem>>, vector<1x16x16xf32>
      %593 = vector.shape_cast %592 : vector<1x16x16xf32> to vector<16x16xf32>
      %594 = vector.broadcast %591 : f32 to vector<16x16xf32>
      %595 = arith.mulf %594, %593 : vector<16x16xf32>
      %596 = arith.addf %590, %595 : vector<16x16xf32>
      %c95 = arith.constant 95 : index
      %597 = memref.load %arg2[%c95] : memref<98xf32, #tpu.memory_space<smem>>
      %c1_361 = arith.constant 1 : index
      %c6_362 = arith.constant 6 : index
      %c0_363 = arith.constant 0 : index
      %598 = vector.load %arg6[%c1_361, %c6_362, %c0_363] : memref<2x22x16xf32, #tpu.memory_space<vmem>>, vector<1x16x16xf32>
      %599 = vector.shape_cast %598 : vector<1x16x16xf32> to vector<16x16xf32>
      %600 = vector.broadcast %597 : f32 to vector<16x16xf32>
      %601 = arith.mulf %600, %599 : vector<16x16xf32>
      %602 = arith.addf %596, %601 : vector<16x16xf32>
      %c1_364 = arith.constant 1 : index
      %c0_365 = arith.constant 0 : index
      %c5_366 = arith.constant 5 : index
      %603 = vector.load %arg5[%c1_364, %c0_365, %c5_366] : memref<2x22x22xf32, #tpu.memory_space<vmem>>, vector<1x22x16xf32>
      %604 = vector.shape_cast %603 : vector<1x22x16xf32> to vector<22x16xf32>
      %c0_367 = arith.constant 0 : index
      %c0_368 = arith.constant 0 : index
      %c0_369 = arith.constant 0 : index
      %605 = vector.load %arg6[%c0_367, %c0_368, %c0_369] : memref<2x22x16xf32, #tpu.memory_space<vmem>>, vector<1x22x16xf32>
      %606 = vector.shape_cast %605 : vector<1x22x16xf32> to vector<22x16xf32>
      %607 = vector.shape_cast %604 : vector<22x16xf32> to vector<1x22x16xf32>
      tpu.vector_store %arg6[%c0_367, %c0_368, %c0_369], %607 {strides = array<i32>} : memref<2x22x16xf32, #tpu.memory_space<vmem>>, vector<1x22x16xf32>,
      %c54 = arith.constant 54 : index
      %608 = memref.load %arg2[%c54] : memref<98xf32, #tpu.memory_space<smem>>
      %c0_370 = arith.constant 0 : index
      %c0_371 = arith.constant 0 : index
      %c0_372 = arith.constant 0 : index
      %609 = vector.load %arg6[%c0_370, %c0_371, %c0_372] : memref<2x22x16xf32, #tpu.memory_space<vmem>>, vector<1x16x16xf32>
      %610 = vector.shape_cast %609 : vector<1x16x16xf32> to vector<16x16xf32>
      %611 = vector.broadcast %608 : f32 to vector<16x16xf32>
      %612 = arith.mulf %611, %610 : vector<16x16xf32>
      %613 = arith.addf %461, %612 : vector<16x16xf32>
      %c61 = arith.constant 61 : index
      %614 = memref.load %arg2[%c61] : memref<98xf32, #tpu.memory_space<smem>>
      %c0_373 = arith.constant 0 : index
      %c1_374 = arith.constant 1 : index
      %c0_375 = arith.constant 0 : index
      %615 = vector.load %arg6[%c0_373, %c1_374, %c0_375] : memref<2x22x16xf32, #tpu.memory_space<vmem>>, vector<1x16x16xf32>
      %616 = vector.shape_cast %615 : vector<1x16x16xf32> to vector<16x16xf32>
      %617 = vector.broadcast %614 : f32 to vector<16x16xf32>
      %618 = arith.mulf %617, %616 : vector<16x16xf32>
      %619 = arith.addf %613, %618 : vector<16x16xf32>
      %c68 = arith.constant 68 : index
      %620 = memref.load %arg2[%c68] : memref<98xf32, #tpu.memory_space<smem>>
      %c0_376 = arith.constant 0 : index
      %c2_377 = arith.constant 2 : index
      %c0_378 = arith.constant 0 : index
      %621 = vector.load %arg6[%c0_376, %c2_377, %c0_378] : memref<2x22x16xf32, #tpu.memory_space<vmem>>, vector<1x16x16xf32>
      %622 = vector.shape_cast %621 : vector<1x16x16xf32> to vector<16x16xf32>
      %623 = vector.broadcast %620 : f32 to vector<16x16xf32>
      %624 = arith.mulf %623, %622 : vector<16x16xf32>
      %625 = arith.addf %619, %624 : vector<16x16xf32>
      %c75 = arith.constant 75 : index
      %626 = memref.load %arg2[%c75] : memref<98xf32, #tpu.memory_space<smem>>
      %c0_379 = arith.constant 0 : index
      %c3_380 = arith.constant 3 : index
      %c0_381 = arith.constant 0 : index
      %627 = vector.load %arg6[%c0_379, %c3_380, %c0_381] : memref<2x22x16xf32, #tpu.memory_space<vmem>>, vector<1x16x16xf32>
      %628 = vector.shape_cast %627 : vector<1x16x16xf32> to vector<16x16xf32>
      %629 = vector.broadcast %626 : f32 to vector<16x16xf32>
      %630 = arith.mulf %629, %628 : vector<16x16xf32>
      %631 = arith.addf %625, %630 : vector<16x16xf32>
      %c82 = arith.constant 82 : index
      %632 = memref.load %arg2[%c82] : memref<98xf32, #tpu.memory_space<smem>>
      %c0_382 = arith.constant 0 : index
      %c4_383 = arith.constant 4 : index
      %c0_384 = arith.constant 0 : index
      %633 = vector.load %arg6[%c0_382, %c4_383, %c0_384] : memref<2x22x16xf32, #tpu.memory_space<vmem>>, vector<1x16x16xf32>
      %634 = vector.shape_cast %633 : vector<1x16x16xf32> to vector<16x16xf32>
      %635 = vector.broadcast %632 : f32 to vector<16x16xf32>
      %636 = arith.mulf %635, %634 : vector<16x16xf32>
      %637 = arith.addf %631, %636 : vector<16x16xf32>
      %c89 = arith.constant 89 : index
      %638 = memref.load %arg2[%c89] : memref<98xf32, #tpu.memory_space<smem>>
      %c0_385 = arith.constant 0 : index
      %c5_386 = arith.constant 5 : index
      %c0_387 = arith.constant 0 : index
      %639 = vector.load %arg6[%c0_385, %c5_386, %c0_387] : memref<2x22x16xf32, #tpu.memory_space<vmem>>, vector<1x16x16xf32>
      %640 = vector.shape_cast %639 : vector<1x16x16xf32> to vector<16x16xf32>
      %641 = vector.broadcast %638 : f32 to vector<16x16xf32>
      %642 = arith.mulf %641, %640 : vector<16x16xf32>
      %643 = arith.addf %637, %642 : vector<16x16xf32>
      %c96 = arith.constant 96 : index
      %644 = memref.load %arg2[%c96] : memref<98xf32, #tpu.memory_space<smem>>
      %c0_388 = arith.constant 0 : index
      %c6_389 = arith.constant 6 : index
      %c0_390 = arith.constant 0 : index
      %645 = vector.load %arg6[%c0_388, %c6_389, %c0_390] : memref<2x22x16xf32, #tpu.memory_space<vmem>>, vector<1x16x16xf32>
      %646 = vector.shape_cast %645 : vector<1x16x16xf32> to vector<16x16xf32>
      %647 = vector.broadcast %644 : f32 to vector<16x16xf32>
      %648 = arith.mulf %647, %646 : vector<16x16xf32>
      %649 = arith.addf %643, %648 : vector<16x16xf32>
      %c1_391 = arith.constant 1 : index
      %c0_392 = arith.constant 0 : index
      %c6_393 = arith.constant 6 : index
      %650 = vector.load %arg5[%c1_391, %c0_392, %c6_393] : memref<2x22x22xf32, #tpu.memory_space<vmem>>, vector<1x22x16xf32>
      %651 = vector.shape_cast %650 : vector<1x22x16xf32> to vector<22x16xf32>
      %c1_394 = arith.constant 1 : index
      %c0_395 = arith.constant 0 : index
      %c0_396 = arith.constant 0 : index
      %652 = vector.load %arg6[%c1_394, %c0_395, %c0_396] : memref<2x22x16xf32, #tpu.memory_space<vmem>>, vector<1x22x16xf32>
      %653 = vector.shape_cast %652 : vector<1x22x16xf32> to vector<22x16xf32>
      %654 = vector.shape_cast %651 : vector<22x16xf32> to vector<1x22x16xf32>
      tpu.vector_store %arg6[%c1_394, %c0_395, %c0_396], %654 {strides = array<i32>} : memref<2x22x16xf32, #tpu.memory_space<vmem>>, vector<1x22x16xf32>,
      %c55 = arith.constant 55 : index
      %655 = memref.load %arg2[%c55] : memref<98xf32, #tpu.memory_space<smem>>
      %c1_397 = arith.constant 1 : index
      %c0_398 = arith.constant 0 : index
      %c0_399 = arith.constant 0 : index
      %656 = vector.load %arg6[%c1_397, %c0_398, %c0_399] : memref<2x22x16xf32, #tpu.memory_space<vmem>>, vector<1x16x16xf32>
      %657 = vector.shape_cast %656 : vector<1x16x16xf32> to vector<16x16xf32>
      %658 = vector.broadcast %655 : f32 to vector<16x16xf32>
      %659 = arith.mulf %658, %657 : vector<16x16xf32>
      %660 = arith.addf %508, %659 : vector<16x16xf32>
      %c62 = arith.constant 62 : index
      %661 = memref.load %arg2[%c62] : memref<98xf32, #tpu.memory_space<smem>>
      %c1_400 = arith.constant 1 : index
      %c1_401 = arith.constant 1 : index
      %c0_402 = arith.constant 0 : index
      %662 = vector.load %arg6[%c1_400, %c1_401, %c0_402] : memref<2x22x16xf32, #tpu.memory_space<vmem>>, vector<1x16x16xf32>
      %663 = vector.shape_cast %662 : vector<1x16x16xf32> to vector<16x16xf32>
      %664 = vector.broadcast %661 : f32 to vector<16x16xf32>
      %665 = arith.mulf %664, %663 : vector<16x16xf32>
      %666 = arith.addf %660, %665 : vector<16x16xf32>
      %c69 = arith.constant 69 : index
      %667 = memref.load %arg2[%c69] : memref<98xf32, #tpu.memory_space<smem>>
      %c1_403 = arith.constant 1 : index
      %c2_404 = arith.constant 2 : index
      %c0_405 = arith.constant 0 : index
      %668 = vector.load %arg6[%c1_403, %c2_404, %c0_405] : memref<2x22x16xf32, #tpu.memory_space<vmem>>, vector<1x16x16xf32>
      %669 = vector.shape_cast %668 : vector<1x16x16xf32> to vector<16x16xf32>
      %670 = vector.broadcast %667 : f32 to vector<16x16xf32>
      %671 = arith.mulf %670, %669 : vector<16x16xf32>
      %672 = arith.addf %666, %671 : vector<16x16xf32>
      %c76 = arith.constant 76 : index
      %673 = memref.load %arg2[%c76] : memref<98xf32, #tpu.memory_space<smem>>
      %c1_406 = arith.constant 1 : index
      %c3_407 = arith.constant 3 : index
      %c0_408 = arith.constant 0 : index
      %674 = vector.load %arg6[%c1_406, %c3_407, %c0_408] : memref<2x22x16xf32, #tpu.memory_space<vmem>>, vector<1x16x16xf32>
      %675 = vector.shape_cast %674 : vector<1x16x16xf32> to vector<16x16xf32>
      %676 = vector.broadcast %673 : f32 to vector<16x16xf32>
      %677 = arith.mulf %676, %675 : vector<16x16xf32>
      %678 = arith.addf %672, %677 : vector<16x16xf32>
      %c83 = arith.constant 83 : index
      %679 = memref.load %arg2[%c83] : memref<98xf32, #tpu.memory_space<smem>>
      %c1_409 = arith.constant 1 : index
      %c4_410 = arith.constant 4 : index
      %c0_411 = arith.constant 0 : index
      %680 = vector.load %arg6[%c1_409, %c4_410, %c0_411] : memref<2x22x16xf32, #tpu.memory_space<vmem>>, vector<1x16x16xf32>
      %681 = vector.shape_cast %680 : vector<1x16x16xf32> to vector<16x16xf32>
      %682 = vector.broadcast %679 : f32 to vector<16x16xf32>
      %683 = arith.mulf %682, %681 : vector<16x16xf32>
      %684 = arith.addf %678, %683 : vector<16x16xf32>
      %c90 = arith.constant 90 : index
      %685 = memref.load %arg2[%c90] : memref<98xf32, #tpu.memory_space<smem>>
      %c1_412 = arith.constant 1 : index
      %c5_413 = arith.constant 5 : index
      %c0_414 = arith.constant 0 : index
      %686 = vector.load %arg6[%c1_412, %c5_413, %c0_414] : memref<2x22x16xf32, #tpu.memory_space<vmem>>, vector<1x16x16xf32>
      %687 = vector.shape_cast %686 : vector<1x16x16xf32> to vector<16x16xf32>
      %688 = vector.broadcast %685 : f32 to vector<16x16xf32>
      %689 = arith.mulf %688, %687 : vector<16x16xf32>
      %690 = arith.addf %684, %689 : vector<16x16xf32>
      %c97 = arith.constant 97 : index
      %691 = memref.load %arg2[%c97] : memref<98xf32, #tpu.memory_space<smem>>
      %c1_415 = arith.constant 1 : index
      %c6_416 = arith.constant 6 : index
      %c0_417 = arith.constant 0 : index
      %692 = vector.load %arg6[%c1_415, %c6_416, %c0_417] : memref<2x22x16xf32, #tpu.memory_space<vmem>>, vector<1x16x16xf32>
      %693 = vector.shape_cast %692 : vector<1x16x16xf32> to vector<16x16xf32>
      %694 = vector.broadcast %691 : f32 to vector<16x16xf32>
      %695 = arith.mulf %694, %693 : vector<16x16xf32>
      %696 = arith.addf %690, %695 : vector<16x16xf32>
      %697 = arith.addf %649, %696 : vector<16x16xf32>
      %698 = arith.addf %555, %602 : vector<16x16xf32>
      %699 = arith.addf %697, %698 : vector<16x16xf32>
      %c0_418 = arith.constant 0 : index
      %700 = memref.load %arg3[%c0_418] : memref<1xf32, #tpu.memory_space<smem>>
      %701 = vector.broadcast %700 : f32 to vector<16x16xf32>
      %702 = arith.addf %699, %701 : vector<16x16xf32>
      %703 = arith.negf %702 : vector<16x16xf32>
      %704 = math.exp %703 : vector<16x16xf32>
      %cst_419 = arith.constant 1.000000e+00 : f32
      %705 = vector.broadcast %cst_419 : f32 to vector<16x16xf32>
      %706 = arith.addf %705, %704 : vector<16x16xf32>
      %707 = arith.divf %705, %706 : vector<16x16xf32>
      %708 = arith.index_cast %10 : i32 to index
      %c0_420 = arith.constant 0 : index
      %c0_421 = arith.constant 0 : index
      %c0_422 = arith.constant 0 : index
      %709 = vector.load %arg1[%708, %c0_420, %c0_421, %c0_422] : memref<2x4x16x16xf32, #tpu.memory_space<vmem>>, vector<1x1x16x16xf32>
      %710 = vector.shape_cast %709 : vector<1x1x16x16xf32> to vector<16x16xf32>
      %711 = arith.mulf %710, %707 : vector<16x16xf32>
      %712 = arith.index_cast %10 : i32 to index
      %c0_423 = arith.constant 0 : index
      %c0_424 = arith.constant 0 : index
      %c0_425 = arith.constant 0 : index
      %713 = vector.load %arg4[%712, %c0_423, %c0_424, %c0_425] : memref<2x4x16x16xf32, #tpu.memory_space<vmem>>, vector<1x1x16x16xf32>
      %714 = vector.shape_cast %713 : vector<1x1x16x16xf32> to vector<16x16xf32>
      %715 = vector.shape_cast %711 : vector<16x16xf32> to vector<1x1x16x16xf32>
      tpu.vector_store %arg4[%712, %c0_423, %c0_424, %c0_425], %715 {strides = array<i32>} : memref<2x4x16x16xf32, #tpu.memory_space<vmem>>, vector<1x1x16x16xf32>,
      %716 = arith.index_cast %10 : i32 to index
      %c1_426 = arith.constant 1 : index
      %c0_427 = arith.constant 0 : index
      %c0_428 = arith.constant 0 : index
      %717 = vector.load %arg1[%716, %c1_426, %c0_427, %c0_428] : memref<2x4x16x16xf32, #tpu.memory_space<vmem>>, vector<1x1x16x16xf32>
      %718 = vector.shape_cast %717 : vector<1x1x16x16xf32> to vector<16x16xf32>
      %719 = arith.mulf %718, %707 : vector<16x16xf32>
      %720 = arith.index_cast %10 : i32 to index
      %c1_429 = arith.constant 1 : index
      %c0_430 = arith.constant 0 : index
      %c0_431 = arith.constant 0 : index
      %721 = vector.load %arg4[%720, %c1_429, %c0_430, %c0_431] : memref<2x4x16x16xf32, #tpu.memory_space<vmem>>, vector<1x1x16x16xf32>
      %722 = vector.shape_cast %721 : vector<1x1x16x16xf32> to vector<16x16xf32>
      %723 = vector.shape_cast %719 : vector<16x16xf32> to vector<1x1x16x16xf32>
      tpu.vector_store %arg4[%720, %c1_429, %c0_430, %c0_431], %723 {strides = array<i32>} : memref<2x4x16x16xf32, #tpu.memory_space<vmem>>, vector<1x1x16x16xf32>,
      %724 = arith.index_cast %10 : i32 to index
      %c2_432 = arith.constant 2 : index
      %c0_433 = arith.constant 0 : index
      %c0_434 = arith.constant 0 : index
      %725 = vector.load %arg1[%724, %c2_432, %c0_433, %c0_434] : memref<2x4x16x16xf32, #tpu.memory_space<vmem>>, vector<1x1x16x16xf32>
      %726 = vector.shape_cast %725 : vector<1x1x16x16xf32> to vector<16x16xf32>
      %727 = arith.mulf %726, %707 : vector<16x16xf32>
      %728 = arith.index_cast %10 : i32 to index
      %c2_435 = arith.constant 2 : index
      %c0_436 = arith.constant 0 : index
      %c0_437 = arith.constant 0 : index
      %729 = vector.load %arg4[%728, %c2_435, %c0_436, %c0_437] : memref<2x4x16x16xf32, #tpu.memory_space<vmem>>, vector<1x1x16x16xf32>
      %730 = vector.shape_cast %729 : vector<1x1x16x16xf32> to vector<16x16xf32>
      %731 = vector.shape_cast %727 : vector<16x16xf32> to vector<1x1x16x16xf32>
      tpu.vector_store %arg4[%728, %c2_435, %c0_436, %c0_437], %731 {strides = array<i32>} : memref<2x4x16x16xf32, #tpu.memory_space<vmem>>, vector<1x1x16x16xf32>,
      %732 = arith.index_cast %10 : i32 to index
      %c3_438 = arith.constant 3 : index
      %c0_439 = arith.constant 0 : index
      %c0_440 = arith.constant 0 : index
      %733 = vector.load %arg1[%732, %c3_438, %c0_439, %c0_440] : memref<2x4x16x16xf32, #tpu.memory_space<vmem>>, vector<1x1x16x16xf32>
      %734 = vector.shape_cast %733 : vector<1x1x16x16xf32> to vector<16x16xf32>
      %735 = arith.mulf %734, %707 : vector<16x16xf32>
      %736 = arith.index_cast %10 : i32 to index
      %c3_441 = arith.constant 3 : index
      %c0_442 = arith.constant 0 : index
      %c0_443 = arith.constant 0 : index
      %737 = vector.load %arg4[%736, %c3_441, %c0_442, %c0_443] : memref<2x4x16x16xf32, #tpu.memory_space<vmem>>, vector<1x1x16x16xf32>
      %738 = vector.shape_cast %737 : vector<1x1x16x16xf32> to vector<16x16xf32>
      %739 = vector.shape_cast %735 : vector<16x16xf32> to vector<1x1x16x16xf32>
      tpu.vector_store %arg4[%736, %c3_441, %c0_442, %c0_443], %739 {strides = array<i32>} : memref<2x4x16x16xf32, #tpu.memory_space<vmem>>, vector<1x1x16x16xf32>,
    }
    %c2_i32_13 = arith.constant 2 : i32
    return
  }
  func.func @transform_0(%arg0: i32) -> (i32, i32, i32, i32) {
    %c0_i32 = arith.constant 0 : i32
    %c0_i32_0 = arith.constant 0 : i32
    %c0_i32_1 = arith.constant 0 : i32
    %c0_i32_2 = arith.constant 0 : i32
    return %arg0, %c0_i32, %c0_i32_0, %c0_i32_1 : i32, i32, i32, i32
  }
  func.func @transform_1(%arg0: i32) -> i32 {
    %c0_i32 = arith.constant 0 : i32
    %c0_i32_0 = arith.constant 0 : i32
    return %c0_i32 : i32
  }
  func.func @transform_2(%arg0: i32) -> i32 {
    %c0_i32 = arith.constant 0 : i32
    %c0_i32_0 = arith.constant 0 : i32
    return %c0_i32 : i32
  }
  func.func @transform_3(%arg0: i32) -> (i32, i32, i32, i32) {
    %c0_i32 = arith.constant 0 : i32
    %c0_i32_0 = arith.constant 0 : i32
    %c0_i32_1 = arith.constant 0 : i32
    %c0_i32_2 = arith.constant 0 : i32
    return %arg0, %c0_i32, %c0_i32_0, %c0_i32_1 : i32, i32, i32, i32
  }
}

</mosaic_0001>

<llo_original>
// kernel: spatial_attention_block.1
$region0: #{spatial_attention_block.1}
  #allocation0 [shape = 'u32[]', space=smem, size = 0x4, offset = 0x4, fixed_abs, tag = 'smem constant byte address 0x4 - core index']
  #allocation1 [shape = 'u32[144,128]{1,0:T(1,128)}', space=vmem, size = 0x12000, scoped, tag = 'internal scratch']
  #allocation2 [shape = 'f32[2,22,22]{2,1,0:T(8,128)}', space=vmem, size = 0x6000, scoped, tag = 'scratch operand']
  #allocation3 [shape = 'f32[2,22,16]{2,1,0:T(8,128)}', space=vmem, size = 0x6000, scoped, tag = 'scratch operand']
  #allocation4 [shape = 'f32[1]{0:T(128)S(6)}', space=smem, size = 0x200, scoped, tag = 'scoped memory for spatial_attention_block.1']
  %s0 = inlined_call_operand.vmem [shape: f32[2,4,16,16], index: 0, kind: input, shape index: {}]
  %s1 = inlined_call_operand.vmem [shape: f32[98], index: 1, kind: input, shape index: {}]
  %s2 = inlined_call_operand.<no memory space> [shape: f32[1], index: 2, kind: input, shape index: {}]
  %s3 = inlined_call_operand.hbm [shape: f32[2,4,16,16], index: 3, kind: output, shape index: {}]
  %s4 = sld [smem:[#allocation0]]
  $region33: #{spatial_attention_block.1} parent=0
    _
  %s6 = ssub.s32 1, %s4
  %s7 = scalar_select 0, %s6, %s4
  %8 = sst [smem:[#allocation4]] %s2
  $region1: #{spatial_attention_block.1} parent=0
    #allocation5 [shape = 'u8[512]{0}', space=smem, size = 0x200, scoped, tag = 'input window, operand 1, single buffered']
    #allocation6 [shape = 's32[1]{0}', space=sflag, size = 0x4, scoped, tag = 'scoped memory for spatial_attention_block.1']
    #allocation7 [shape = 's32[1]{0}', space=sflag, size = 0x4, scoped, tag = 'scoped memory for spatial_attention_block.1']
    #allocation8 [shape = 'u8[65536]{0}', space=vmem, size = 0x10000, scoped, tag = 'output window, operand 0, single buffered']
    %9 = vsyncpa [#allocation7], 0
    %10 = vsyncpa [#allocation6], 0
    // Predicated region
    $region2: #{spatial_attention_block.1} parent=1 // pred_check
      _
    $region3: #{spatial_attention_block.1} parent=1 // pred_check_branch
      %12 = sbr.rel (0) target = $region5
    $region4: #{spatial_attention_block.1} parent=1 // pred_region
      _
    $region5: #{spatial_attention_block.1} parent=1 // pred_fallthru
      _
    // Predicated region
    $region6: #{spatial_attention_block.1} parent=1 // pred_check
      _
    $region7: #{spatial_attention_block.1} parent=1 // pred_check_branch
      %14 = sbr.rel (0) target = $region9
    $region8: #{spatial_attention_block.1} parent=1 // pred_region
      %s16 = ssub.s32 16, 16
      %17 = vsyncadd [#allocation7], %s16
      %s19 = sshll.u32 %s1, 4
      %s20 = int_to_ptr.vmem [resolvable:$true] %s19
      %22 = dma.vmem_to_smem %s20, 16, [#allocation5], [#allocation7]
    $region9: #{spatial_attention_block.1} parent=1 // pred_fallthru
      _
    // Predicated region
    $region10: #{spatial_attention_block.1} parent=1 // pred_check
      _
    $region11: #{spatial_attention_block.1} parent=1 // pred_check_branch
      %24 = sbr.rel (0) target = $region13
    $region12: #{spatial_attention_block.1} parent=1 // pred_region
      _
    $region13: #{spatial_attention_block.1} parent=1 // pred_fallthru
      _
    // Predicated region
    $region14: #{spatial_attention_block.1} parent=1 // pred_check
      _
    $region15: #{spatial_attention_block.1} parent=1 // pred_check_branch
      %26 = sbr.rel (0) target = $region17
    $region16: #{spatial_attention_block.1} parent=1 // pred_region
      %27 = dma.done [#allocation7], 16
    $region17: #{spatial_attention_block.1} parent=1 // pred_fallthru
      _
    %28 = sfence
    %vm29 = vcmask 174080
    %30 = vst.msk [vmem:[#allocation2] sm:$0x7] %vm29, 0.0
    %31 = vst.msk [vmem:[#allocation2 + $0x18] sm:$0x7] %vm29, 0.0
    %32 = vst.msk [vmem:[#allocation2 + $0x13] sm:$0x7] %vm29, 0.0
    %33 = vst.msk [vmem:[#allocation2 + $0x2b] sm:$0x7] %vm29, 0.0
    %vm34 = vcmask 23552
    %35 = vst.msk [vmem:[#allocation2] sm:$0xff] %vm34, 0.0
    %36 = vst.msk [vmem:[#allocation2 + $0x8] sm:$0xff] %vm34, 0.0
    %vm37 = vcmask 21504
    %38 = vst.msk [vmem:[#allocation2 + $0x10] sm:$0x3f] %vm37, 0.0
    %39 = vst.msk [vmem:[#allocation2 + $0x18] sm:$0xff] %vm34, 0.0
    %40 = vst.msk [vmem:[#allocation2 + $0x20] sm:$0xff] %vm34, 0.0
    %41 = vst.msk [vmem:[#allocation2 + $0x28] sm:$0x3f] %vm37, 0.0
    %vm42 = vcmask 179352
    %43 = vst.msk [vmem:[#allocation2] sm:$0xff] %vm42, 0.0
    %44 = vst.msk [vmem:[#allocation2 + $0x8] sm:$0xff] %vm42, 0.0
    %vm45 = vcmask 177304
    %46 = vst.msk [vmem:[#allocation2 + $0x10] sm:$0x3f] %vm45, 0.0
    %47 = vst.msk [vmem:[#allocation2 + $0x18] sm:$0xff] %vm42, 0.0
    %48 = vst.msk [vmem:[#allocation2 + $0x20] sm:$0xff] %vm42, 0.0
    %49 = vst.msk [vmem:[#allocation2 + $0x28] sm:$0x3f] %vm45, 0.0
    loop: start=0, step=1, limit=2
    $region18: #{spatial_attention_block.1} parent=1 // loop_pre_header
      _
    $region19: #{spatial_attention_block.1} parent=1 // loop_header
      %s51 = sphi 0, %s55
      %p52 = scmp.ge.s32.totalorder %s51, 2
    $region20: #{spatial_attention_block.1} parent=1 // loop_header_branch
      %54 = sbr.rel (%p52) target = $region24
    $region21: #{spatial_attention_block.1} parent=1 // loop_body
      %s56 = smul.u32 %s51, 64
      %s57 = scalar_lea.vmem %s0, %s56
      %v58 = vld [vmem:[%s57] sm:$0xff]
      %v59 = vld [vmem:[%s57 + $0x8] sm:$0xff]
      %s60 = sadd.s32 16, %s56
      %s61 = scalar_lea.vmem %s0, %s60
      %v62 = vld [vmem:[%s61] sm:$0xff]
      %v63 = vld [vmem:[%s61 + $0x8] sm:$0xff]
      %s64 = sadd.s32 32, %s56
      %s65 = scalar_lea.vmem %s0, %s64
      %v66 = vld [vmem:[%s65] sm:$0xff]
      %v67 = vld [vmem:[%s65 + $0x8] sm:$0xff]
      %v68 = vmax.f32 %v58, %v66
      %v69 = vmax.f32 %v59, %v67
      %v70 = vadd.f32 %v58, %v66
      %v71 = vadd.f32 %v59, %v67
      %s72 = sadd.s32 48, %s56
      %s73 = scalar_lea.vmem %s0, %s72
      %v74 = vld [vmem:[%s73] sm:$0xff]
      %v75 = vld [vmem:[%s73 + $0x8] sm:$0xff]
      %v76 = vmax.f32 %v62, %v74
      %v77 = vmax.f32 %v63, %v75
      %v78 = vadd.f32 %v62, %v74
      %v79 = vadd.f32 %v63, %v75
      %v80 = vmax.f32 %v68, %v76
      %v81 = vmax.f32 %v69, %v77
      %v82 = vadd.f32 %v70, %v78
      %v83 = vadd.f32 %v71, %v79
      %86 = vrot.lane.b32.xlu0 %v80, 3
      %v87 = vpop.permute.xlu0 %86
      %88 = vrot.lane.b32.xlu0 %v81, 3
      %v89 = vpop.permute.xlu0 %88
      %vm92 = vcmask 154648
      %93 = vst.msk [vmem:[#allocation2 + $0x3] sm:$0xff] %vm92, %v87
      %94 = vst.msk [vmem:[#allocation2 + $0xb] sm:$0xff] %vm92, %v89
      %97 = vrot.lane.b32.xlu0 %v82, 3
      %v98 = vpop.permute.xlu0 %97
      %99 = vrot.lane.b32.xlu0 %v83, 3
      %v100 = vpop.permute.xlu0 %99
      %s103 = scalar_lea.vmem [#allocation2], 24
      %104 = vst.msk [vmem:[%s103 + $0x3] sm:$0xff] %vm92, %v98
      %105 = vst.msk [vmem:[%s103 + $0xb] sm:$0xff] %vm92, %v100
      %v106 = vld [vmem:[#allocation2] sm:$0xff]
      %v107 = vld [vmem:[#allocation2 + $0x8] sm:$0xff]
      %v108 = vld [vmem:[#allocation2 + $0x10] sm:$0x3f]
      %vm109 = vcmask 130048
      %110 = vst.msk [vmem:[#allocation3] sm:$0xff] %vm109, %v106
      %111 = vst.msk [vmem:[#allocation3 + $0x8] sm:$0xff] %vm109, %v107
      %vm112 = vcmask 128000
      %113 = vst.msk [vmem:[#allocation3 + $0x10] sm:$0x3f] %vm112, %v108
      %s114 = sld [smem:[#allocation5]]
      %v115 = vld [vmem:[#allocation3] sm:$0xff]
      %v116 = vld [vmem:[#allocation3 + $0x8] sm:$0xff]
      %v117 = vstv %s114
      %v118 = vmul.f32 %v117, %v115
      %v119 = vmul.f32 %v117, %v116
      %v120 = vadd.f32 %v118, 0.0
      %v121 = vadd.f32 %v119, 0.0
      %s122 = sld [smem:[#allocation5 + $0x7]]
      %v123 = vld [vmem:[#allocation3 + $0x1] sm:$0xff]
      %v124 = vld [vmem:[#allocation3 + $0x9] sm:$0xff]
      %v125 = vstv %s122
      %v126 = vmul.f32 %v125, %v123
      %v127 = vmul.f32 %v125, %v124
      %v128 = vadd.f32 %v120, %v126
      %v129 = vadd.f32 %v121, %v127
      %s130 = sld [smem:[#allocation5 + $0xe]]
      %v131 = vld [vmem:[#allocation3 + $0x2] sm:$0xff]
      %v132 = vld [vmem:[#allocation3 + $0xa] sm:$0xff]
      %v133 = vstv %s130
      %v134 = vmul.f32 %v133, %v131
      %v135 = vmul.f32 %v133, %v132
      %v136 = vadd.f32 %v128, %v134
      %v137 = vadd.f32 %v129, %v135
      %s138 = sld [smem:[#allocation5 + $0x15]]
      %v139 = vld [vmem:[#allocation3 + $0x3] sm:$0xff]
      %v140 = vld [vmem:[#allocation3 + $0xb] sm:$0xff]
      %v141 = vstv %s138
      %v142 = vmul.f32 %v141, %v139
      %v143 = vmul.f32 %v141, %v140
      %v144 = vadd.f32 %v136, %v142
      %v145 = vadd.f32 %v137, %v143
      %s146 = sld [smem:[#allocation5 + $0x1c]]
      %v147 = vld [vmem:[#allocation3 + $0x4] sm:$0xff]
      %v148 = vld [vmem:[#allocation3 + $0xc] sm:$0xff]
      %v149 = vstv %s146
      %v150 = vmul.f32 %v149, %v147
      %v151 = vmul.f32 %v149, %v148
      %v152 = vadd.f32 %v144, %v150
      %v153 = vadd.f32 %v145, %v151
      %s154 = sld [smem:[#allocation5 + $0x23]]
      %v155 = vld [vmem:[#allocation3 + $0x5] sm:$0xff]
      %v156 = vld [vmem:[#allocation3 + $0xd] sm:$0xff]
      %v157 = vstv %s154
      %v158 = vmul.f32 %v157, %v155
      %v159 = vmul.f32 %v157, %v156
      %v160 = vadd.f32 %v152, %v158
      %v161 = vadd.f32 %v153, %v159
      %s162 = sld [smem:[#allocation5 + $0x2a]]
      %v163 = vld [vmem:[#allocation3 + $0x6] sm:$0xff]
      %v164 = vld [vmem:[#allocation3 + $0xe] sm:$0xff]
      %v165 = vstv %s162
      %v166 = vmul.f32 %v165, %v163
      %v167 = vmul.f32 %v165, %v164
      %v168 = vadd.f32 %v160, %v166
      %v169 = vadd.f32 %v161, %v167
      %v170 = vld [vmem:[#allocation2] sm:$0xff]
      %v171 = vld [vmem:[#allocation2 + $0x8] sm:$0xff]
      %v172 = vld [vmem:[#allocation2 + $0x10] sm:$0x3f]
      %176 = vrot.lane.b32.xlu0 %v170, 127
      %v177 = vpop.permute.xlu0 %176
      %178 = vrot.lane.b32.xlu0 %v171, 127
      %v179 = vpop.permute.xlu0 %178
      %180 = vrot.lane.b32.xlu0 %v172, 127
      %v181 = vpop.permute.xlu0 %180
      %s185 = scalar_lea.vmem [#allocation3], 24
      %186 = vst.msk [vmem:[%s185] sm:$0xff] %vm109, %v177
      %187 = vst.msk [vmem:[%s185 + $0x8] sm:$0xff] %vm109, %v179
      %188 = vst.msk [vmem:[%s185 + $0x10] sm:$0x3f] %vm112, %v181
      %s189 = sld [smem:[#allocation5 + $0x1]]
      %v190 = vld [vmem:[%s185] sm:$0xff]
      %v191 = vld [vmem:[%s185 + $0x8] sm:$0xff]
      %v192 = vstv %s189
      %v193 = vmul.f32 %v192, %v190
      %v194 = vmul.f32 %v192, %v191
      %v195 = vadd.f32 %v193, 0.0
      %v196 = vadd.f32 %v194, 0.0
      %s197 = sld [smem:[#allocation5 + $0x8]]
      %v198 = vld [vmem:[%s185 + $0x1] sm:$0xff]
      %v199 = vld [vmem:[%s185 + $0x9] sm:$0xff]
      %v200 = vstv %s197
      %v201 = vmul.f32 %v200, %v198
      %v202 = vmul.f32 %v200, %v199
      %v203 = vadd.f32 %v195, %v201
      %v204 = vadd.f32 %v196, %v202
      %s205 = sld [smem:[#allocation5 + $0xf]]
      %v206 = vld [vmem:[%s185 + $0x2] sm:$0xff]
      %v207 = vld [vmem:[%s185 + $0xa] sm:$0xff]
      %v208 = vstv %s205
      %v209 = vmul.f32 %v208, %v206
      %v210 = vmul.f32 %v208, %v207
      %v211 = vadd.f32 %v203, %v209
      %v212 = vadd.f32 %v204, %v210
      %s213 = sld [smem:[#allocation5 + $0x16]]
      %v214 = vld [vmem:[%s185 + $0x3] sm:$0xff]
      %v215 = vld [vmem:[%s185 + $0xb] sm:$0xff]
      %v216 = vstv %s213
      %v217 = vmul.f32 %v216, %v214
      %v218 = vmul.f32 %v216, %v215
      %v219 = vadd.f32 %v211, %v217
      %v220 = vadd.f32 %v212, %v218
      %s221 = sld [smem:[#allocation5 + $0x1d]]
      %v222 = vld [vmem:[%s185 + $0x4] sm:$0xff]
      %v223 = vld [vmem:[%s185 + $0xc] sm:$0xff]
      %v224 = vstv %s221
      %v225 = vmul.f32 %v224, %v222
      %v226 = vmul.f32 %v224, %v223
      %v227 = vadd.f32 %v219, %v225
      %v228 = vadd.f32 %v220, %v226
      %s229 = sld [smem:[#allocation5 + $0x24]]
      %v230 = vld [vmem:[%s185 + $0x5] sm:$0xff]
      %v231 = vld [vmem:[%s185 + $0xd] sm:$0xff]
      %v232 = vstv %s229
      %v233 = vmul.f32 %v232, %v230
      %v234 = vmul.f32 %v232, %v231
      %v235 = vadd.f32 %v227, %v233
      %v236 = vadd.f32 %v228, %v234
      %s237 = sld [smem:[#allocation5 + $0x2b]]
      %v238 = vld [vmem:[%s185 + $0x6] sm:$0xff]
      %v239 = vld [vmem:[%s185 + $0xe] sm:$0xff]
      %v240 = vstv %s237
      %v241 = vmul.f32 %v240, %v238
      %v242 = vmul.f32 %v240, %v239
      %v243 = vadd.f32 %v235, %v241
      %v244 = vadd.f32 %v236, %v242
      %v245 = vld [vmem:[#allocation2] sm:$0xff]
      %v246 = vld [vmem:[#allocation2 + $0x8] sm:$0xff]
      %v247 = vld [vmem:[#allocation2 + $0x10] sm:$0x3f]
      %251 = vrot.lane.b32.xlu0 %v245, 126
      %v252 = vpop.permute.xlu0 %251
      %253 = vrot.lane.b32.xlu0 %v246, 126
      %v254 = vpop.permute.xlu0 %253
      %255 = vrot.lane.b32.xlu0 %v247, 126
      %v256 = vpop.permute.xlu0 %255
      %260 = vst.msk [vmem:[#allocation3] sm:$0xff] %vm109, %v252
      %261 = vst.msk [vmem:[#allocation3 + $0x8] sm:$0xff] %vm109, %v254
      %262 = vst.msk [vmem:[#allocation3 + $0x10] sm:$0x3f] %vm112, %v256
      %s263 = sld [smem:[#allocation5 + $0x2]]
      %v264 = vld [vmem:[#allocation3] sm:$0xff]
      %v265 = vld [vmem:[#allocation3 + $0x8] sm:$0xff]
      %v266 = vstv %s263
      %v267 = vmul.f32 %v266, %v264
      %v268 = vmul.f32 %v266, %v265
      %v269 = vadd.f32 %v267, 0.0
      %v270 = vadd.f32 %v268, 0.0
      %s271 = sld [smem:[#allocation5 + $0x9]]
      %v272 = vld [vmem:[#allocation3 + $0x1] sm:$0xff]
      %v273 = vld [vmem:[#allocation3 + $0x9] sm:$0xff]
      %v274 = vstv %s271
      %v275 = vmul.f32 %v274, %v272
      %v276 = vmul.f32 %v274, %v273
      %v277 = vadd.f32 %v269, %v275
      %v278 = vadd.f32 %v270, %v276
      %s279 = sld [smem:[#allocation5 + $0x10]]
      %v280 = vld [vmem:[#allocation3 + $0x2] sm:$0xff]
      %v281 = vld [vmem:[#allocation3 + $0xa] sm:$0xff]
      %v282 = vstv %s279
      %v283 = vmul.f32 %v282, %v280
      %v284 = vmul.f32 %v282, %v281
      %v285 = vadd.f32 %v277, %v283
      %v286 = vadd.f32 %v278, %v284
      %s287 = sld [smem:[#allocation5 + $0x17]]
      %v288 = vld [vmem:[#allocation3 + $0x3] sm:$0xff]
      %v289 = vld [vmem:[#allocation3 + $0xb] sm:$0xff]
      %v290 = vstv %s287
      %v291 = vmul.f32 %v290, %v288
      %v292 = vmul.f32 %v290, %v289
      %v293 = vadd.f32 %v285, %v291
      %v294 = vadd.f32 %v286, %v292
      %s295 = sld [smem:[#allocation5 + $0x1e]]
      %v296 = vld [vmem:[#allocation3 + $0x4] sm:$0xff]
      %v297 = vld [vmem:[#allocation3 + $0xc] sm:$0xff]
      %v298 = vstv %s295
      %v299 = vmul.f32 %v298, %v296
      %v300 = vmul.f32 %v298, %v297
      %v301 = vadd.f32 %v293, %v299
      %v302 = vadd.f32 %v294, %v300
      %s303 = sld [smem:[#allocation5 + $0x25]]
      %v304 = vld [vmem:[#allocation3 + $0x5] sm:$0xff]
      %v305 = vld [vmem:[#allocation3 + $0xd] sm:$0xff]
      %v306 = vstv %s303
      %v307 = vmul.f32 %v306, %v304
      %v308 = vmul.f32 %v306, %v305
      %v309 = vadd.f32 %v301, %v307
      %v310 = vadd.f32 %v302, %v308
      %s311 = sld [smem:[#allocation5 + $0x2c]]
      %v312 = vld [vmem:[#allocation3 + $0x6] sm:$0xff]
      %v313 = vld [vmem:[#allocation3 + $0xe] sm:$0xff]
      %v314 = vstv %s311
      %v315 = vmul.f32 %v314, %v312
      %v316 = vmul.f32 %v314, %v313
      %v317 = vadd.f32 %v309, %v315
      %v318 = vadd.f32 %v310, %v316
      %v319 = vld [vmem:[#allocation2] sm:$0xff]
      %v320 = vld [vmem:[#allocation2 + $0x8] sm:$0xff]
      %v321 = vld [vmem:[#allocation2 + $0x10] sm:$0x3f]
      %325 = vrot.lane.b32.xlu0 %v319, 125
      %v326 = vpop.permute.xlu0 %325
      %327 = vrot.lane.b32.xlu0 %v320, 125
      %v328 = vpop.permute.xlu0 %327
      %329 = vrot.lane.b32.xlu0 %v321, 125
      %v330 = vpop.permute.xlu0 %329
      %334 = vst.msk [vmem:[%s185] sm:$0xff] %vm109, %v326
      %335 = vst.msk [vmem:[%s185 + $0x8] sm:$0xff] %vm109, %v328
      %336 = vst.msk [vmem:[%s185 + $0x10] sm:$0x3f] %vm112, %v330
      %s337 = sld [smem:[#allocation5 + $0x3]]
      %v338 = vld [vmem:[%s185] sm:$0xff]
      %v339 = vld [vmem:[%s185 + $0x8] sm:$0xff]
      %v340 = vstv %s337
      %v341 = vmul.f32 %v340, %v338
      %v342 = vmul.f32 %v340, %v339
      %v343 = vadd.f32 %v341, 0.0
      %v344 = vadd.f32 %v342, 0.0
      %s345 = sld [smem:[#allocation5 + $0xa]]
      %v346 = vld [vmem:[%s185 + $0x1] sm:$0xff]
      %v347 = vld [vmem:[%s185 + $0x9] sm:$0xff]
      %v348 = vstv %s345
      %v349 = vmul.f32 %v348, %v346
      %v350 = vmul.f32 %v348, %v347
      %v351 = vadd.f32 %v343, %v349
      %v352 = vadd.f32 %v344, %v350
      %s353 = sld [smem:[#allocation5 + $0x11]]
      %v354 = vld [vmem:[%s185 + $0x2] sm:$0xff]
      %v355 = vld [vmem:[%s185 + $0xa] sm:$0xff]
      %v356 = vstv %s353
      %v357 = vmul.f32 %v356, %v354
      %v358 = vmul.f32 %v356, %v355
      %v359 = vadd.f32 %v351, %v357
      %v360 = vadd.f32 %v352, %v358
      %s361 = sld [smem:[#allocation5 + $0x18]]
      %v362 = vld [vmem:[%s185 + $0x3] sm:$0xff]
      %v363 = vld [vmem:[%s185 + $0xb] sm:$0xff]
      %v364 = vstv %s361
      %v365 = vmul.f32 %v364, %v362
      %v366 = vmul.f32 %v364, %v363
      %v367 = vadd.f32 %v359, %v365
      %v368 = vadd.f32 %v360, %v366
      %s369 = sld [smem:[#allocation5 + $0x1f]]
      %v370 = vld [vmem:[%s185 + $0x4] sm:$0xff]
      %v371 = vld [vmem:[%s185 + $0xc] sm:$0xff]
      %v372 = vstv %s369
      %v373 = vmul.f32 %v372, %v370
      %v374 = vmul.f32 %v372, %v371
      %v375 = vadd.f32 %v367, %v373
      %v376 = vadd.f32 %v368, %v374
      %s377 = sld [smem:[#allocation5 + $0x26]]
      %v378 = vld [vmem:[%s185 + $0x5] sm:$0xff]
      %v379 = vld [vmem:[%s185 + $0xd] sm:$0xff]
      %v380 = vstv %s377
      %v381 = vmul.f32 %v380, %v378
      %v382 = vmul.f32 %v380, %v379
      %v383 = vadd.f32 %v375, %v381
      %v384 = vadd.f32 %v376, %v382
      %s385 = sld [smem:[#allocation5 + $0x2d]]
      %v386 = vld [vmem:[%s185 + $0x6] sm:$0xff]
      %v387 = vld [vmem:[%s185 + $0xe] sm:$0xff]
      %v388 = vstv %s385
      %v389 = vmul.f32 %v388, %v386
      %v390 = vmul.f32 %v388, %v387
      %v391 = vadd.f32 %v383, %v389
      %v392 = vadd.f32 %v384, %v390
      %v393 = vld [vmem:[#allocation2] sm:$0xff]
      %v394 = vld [vmem:[#allocation2 + $0x8] sm:$0xff]
      %v395 = vld [vmem:[#allocation2 + $0x10] sm:$0x3f]
      %399 = vrot.lane.b32.xlu0 %v393, 124
      %v400 = vpop.permute.xlu0 %399
      %401 = vrot.lane.b32.xlu0 %v394, 124
      %v402 = vpop.permute.xlu0 %401
      %403 = vrot.lane.b32.xlu0 %v395, 124
      %v404 = vpop.permute.xlu0 %403
      %408 = vst.msk [vmem:[#allocation3] sm:$0xff] %vm109, %v400
      %409 = vst.msk [vmem:[#allocation3 + $0x8] sm:$0xff] %vm109, %v402
      %410 = vst.msk [vmem:[#allocation3 + $0x10] sm:$0x3f] %vm112, %v404
      %s411 = sld [smem:[#allocation5 + $0x4]]
      %v412 = vld [vmem:[#allocation3] sm:$0xff]
      %v413 = vld [vmem:[#allocation3 + $0x8] sm:$0xff]
      %v414 = vstv %s411
      %v415 = vmul.f32 %v414, %v412
      %v416 = vmul.f32 %v414, %v413
      %v417 = vadd.f32 %v168, %v415
      %v418 = vadd.f32 %v169, %v416
      %s419 = sld [smem:[#allocation5 + $0xb]]
      %v420 = vld [vmem:[#allocation3 + $0x1] sm:$0xff]
      %v421 = vld [vmem:[#allocation3 + $0x9] sm:$0xff]
      %v422 = vstv %s419
      %v423 = vmul.f32 %v422, %v420
      %v424 = vmul.f32 %v422, %v421
      %v425 = vadd.f32 %v417, %v423
      %v426 = vadd.f32 %v418, %v424
      %s427 = sld [smem:[#allocation5 + $0x12]]
      %v428 = vld [vmem:[#allocation3 + $0x2] sm:$0xff]
      %v429 = vld [vmem:[#allocation3 + $0xa] sm:$0xff]
      %v430 = vstv %s427
      %v431 = vmul.f32 %v430, %v428
      %v432 = vmul.f32 %v430, %v429
      %v433 = vadd.f32 %v425, %v431
      %v434 = vadd.f32 %v426, %v432
      %s435 = sld [smem:[#allocation5 + $0x19]]
      %v436 = vld [vmem:[#allocation3 + $0x3] sm:$0xff]
      %v437 = vld [vmem:[#allocation3 + $0xb] sm:$0xff]
      %v438 = vstv %s435
      %v439 = vmul.f32 %v438, %v436
      %v440 = vmul.f32 %v438, %v437
      %v441 = vadd.f32 %v433, %v439
      %v442 = vadd.f32 %v434, %v440
      %s443 = sld [smem:[#allocation5 + $0x20]]
      %v444 = vld [vmem:[#allocation3 + $0x4] sm:$0xff]
      %v445 = vld [vmem:[#allocation3 + $0xc] sm:$0xff]
      %v446 = vstv %s443
      %v447 = vmul.f32 %v446, %v444
      %v448 = vmul.f32 %v446, %v445
      %v449 = vadd.f32 %v441, %v447
      %v450 = vadd.f32 %v442, %v448
      %s451 = sld [smem:[#allocation5 + $0x27]]
      %v452 = vld [vmem:[#allocation3 + $0x5] sm:$0xff]
      %v453 = vld [vmem:[#allocation3 + $0xd] sm:$0xff]
      %v454 = vstv %s451
      %v455 = vmul.f32 %v454, %v452
      %v456 = vmul.f32 %v454, %v453
      %v457 = vadd.f32 %v449, %v455
      %v458 = vadd.f32 %v450, %v456
      %s459 = sld [smem:[#allocation5 + $0x2e]]
      %v460 = vld [vmem:[#allocation3 + $0x6] sm:$0xff]
      %v461 = vld [vmem:[#allocation3 + $0xe] sm:$0xff]
      %v462 = vstv %s459
      %v463 = vmul.f32 %v462, %v460
      %v464 = vmul.f32 %v462, %v461
      %v465 = vadd.f32 %v457, %v463
      %v466 = vadd.f32 %v458, %v464
      %v467 = vld [vmem:[#allocation2] sm:$0xff]
      %v468 = vld [vmem:[#allocation2 + $0x8] sm:$0xff]
      %v469 = vld [vmem:[#allocation2 + $0x10] sm:$0x3f]
      %473 = vrot.lane.b32.xlu0 %v467, 123
      %v474 = vpop.permute.xlu0 %473
      %475 = vrot.lane.b32.xlu0 %v468, 123
      %v476 = vpop.permute.xlu0 %475
      %477 = vrot.lane.b32.xlu0 %v469, 123
      %v478 = vpop.permute.xlu0 %477
      %482 = vst.msk [vmem:[%s185] sm:$0xff] %vm109, %v474
      %483 = vst.msk [vmem:[%s185 + $0x8] sm:$0xff] %vm109, %v476
      %484 = vst.msk [vmem:[%s185 + $0x10] sm:$0x3f] %vm112, %v478
      %s485 = sld [smem:[#allocation5 + $0x5]]
      %v486 = vld [vmem:[%s185] sm:$0xff]
      %v487 = vld [vmem:[%s185 + $0x8] sm:$0xff]
      %v488 = vstv %s485
      %v489 = vmul.f32 %v488, %v486
      %v490 = vmul.f32 %v488, %v487
      %v491 = vadd.f32 %v243, %v489
      %v492 = vadd.f32 %v244, %v490
      %s493 = sld [smem:[#allocation5 + $0xc]]
      %v494 = vld [vmem:[%s185 + $0x1] sm:$0xff]
      %v495 = vld [vmem:[%s185 + $0x9] sm:$0xff]
      %v496 = vstv %s493
      %v497 = vmul.f32 %v496, %v494
      %v498 = vmul.f32 %v496, %v495
      %v499 = vadd.f32 %v491, %v497
      %v500 = vadd.f32 %v492, %v498
      %s501 = sld [smem:[#allocation5 + $0x13]]
      %v502 = vld [vmem:[%s185 + $0x2] sm:$0xff]
      %v503 = vld [vmem:[%s185 + $0xa] sm:$0xff]
      %v504 = vstv %s501
      %v505 = vmul.f32 %v504, %v502
      %v506 = vmul.f32 %v504, %v503
      %v507 = vadd.f32 %v499, %v505
      %v508 = vadd.f32 %v500, %v506
      %s509 = sld [smem:[#allocation5 + $0x1a]]
      %v510 = vld [vmem:[%s185 + $0x3] sm:$0xff]
      %v511 = vld [vmem:[%s185 + $0xb] sm:$0xff]
      %v512 = vstv %s509
      %v513 = vmul.f32 %v512, %v510
      %v514 = vmul.f32 %v512, %v511
      %v515 = vadd.f32 %v507, %v513
      %v516 = vadd.f32 %v508, %v514
      %s517 = sld [smem:[#allocation5 + $0x21]]
      %v518 = vld [vmem:[%s185 + $0x4] sm:$0xff]
      %v519 = vld [vmem:[%s185 + $0xc] sm:$0xff]
      %v520 = vstv %s517
      %v521 = vmul.f32 %v520, %v518
      %v522 = vmul.f32 %v520, %v519
      %v523 = vadd.f32 %v515, %v521
      %v524 = vadd.f32 %v516, %v522
      %s525 = sld [smem:[#allocation5 + $0x28]]
      %v526 = vld [vmem:[%s185 + $0x5] sm:$0xff]
      %v527 = vld [vmem:[%s185 + $0xd] sm:$0xff]
      %v528 = vstv %s525
      %v529 = vmul.f32 %v528, %v526
      %v530 = vmul.f32 %v528, %v527
      %v531 = vadd.f32 %v523, %v529
      %v532 = vadd.f32 %v524, %v530
      %s533 = sld [smem:[#allocation5 + $0x2f]]
      %v534 = vld [vmem:[%s185 + $0x6] sm:$0xff]
      %v535 = vld [vmem:[%s185 + $0xe] sm:$0xff]
      %v536 = vstv %s533
      %v537 = vmul.f32 %v536, %v534
      %v538 = vmul.f32 %v536, %v535
      %v539 = vadd.f32 %v531, %v537
      %v540 = vadd.f32 %v532, %v538
      %v541 = vld [vmem:[#allocation2] sm:$0xff]
      %v542 = vld [vmem:[#allocation2 + $0x8] sm:$0xff]
      %v543 = vld [vmem:[#allocation2 + $0x10] sm:$0x3f]
      %547 = vrot.lane.b32.xlu0 %v541, 122
      %v548 = vpop.permute.xlu0 %547
      %549 = vrot.lane.b32.xlu0 %v542, 122
      %v550 = vpop.permute.xlu0 %549
      %551 = vrot.lane.b32.xlu0 %v543, 122
      %v552 = vpop.permute.xlu0 %551
      %556 = vst.msk [vmem:[#allocation3] sm:$0xff] %vm109, %v548
      %557 = vst.msk [vmem:[#allocation3 + $0x8] sm:$0xff] %vm109, %v550
      %558 = vst.msk [vmem:[#allocation3 + $0x10] sm:$0x3f] %vm112, %v552
      %s559 = sld [smem:[#allocation5 + $0x6]]
      %v560 = vld [vmem:[#allocation3] sm:$0xff]
      %v561 = vld [vmem:[#allocation3 + $0x8] sm:$0xff]
      %v562 = vstv %s559
      %v563 = vmul.f32 %v562, %v560
      %v564 = vmul.f32 %v562, %v561
      %v565 = vadd.f32 %v317, %v563
      %v566 = vadd.f32 %v318, %v564
      %s567 = sld [smem:[#allocation5 + $0xd]]
      %v568 = vld [vmem:[#allocation3 + $0x1] sm:$0xff]
      %v569 = vld [vmem:[#allocation3 + $0x9] sm:$0xff]
      %v570 = vstv %s567
      %v571 = vmul.f32 %v570, %v568
      %v572 = vmul.f32 %v570, %v569
      %v573 = vadd.f32 %v565, %v571
      %v574 = vadd.f32 %v566, %v572
      %s575 = sld [smem:[#allocation5 + $0x14]]
      %v576 = vld [vmem:[#allocation3 + $0x2] sm:$0xff]
      %v577 = vld [vmem:[#allocation3 + $0xa] sm:$0xff]
      %v578 = vstv %s575
      %v579 = vmul.f32 %v578, %v576
      %v580 = vmul.f32 %v578, %v577
      %v581 = vadd.f32 %v573, %v579
      %v582 = vadd.f32 %v574, %v580
      %s583 = sld [smem:[#allocation5 + $0x1b]]
      %v584 = vld [vmem:[#allocation3 + $0x3] sm:$0xff]
      %v585 = vld [vmem:[#allocation3 + $0xb] sm:$0xff]
      %v586 = vstv %s583
      %v587 = vmul.f32 %v586, %v584
      %v588 = vmul.f32 %v586, %v585
      %v589 = vadd.f32 %v581, %v587
      %v590 = vadd.f32 %v582, %v588
      %s591 = sld [smem:[#allocation5 + $0x22]]
      %v592 = vld [vmem:[#allocation3 + $0x4] sm:$0xff]
      %v593 = vld [vmem:[#allocation3 + $0xc] sm:$0xff]
      %v594 = vstv %s591
      %v595 = vmul.f32 %v594, %v592
      %v596 = vmul.f32 %v594, %v593
      %v597 = vadd.f32 %v589, %v595
      %v598 = vadd.f32 %v590, %v596
      %s599 = sld [smem:[#allocation5 + $0x29]]
      %v600 = vld [vmem:[#allocation3 + $0x5] sm:$0xff]
      %v601 = vld [vmem:[#allocation3 + $0xd] sm:$0xff]
      %v602 = vstv %s599
      %v603 = vmul.f32 %v602, %v600
      %v604 = vmul.f32 %v602, %v601
      %v605 = vadd.f32 %v597, %v603
      %v606 = vadd.f32 %v598, %v604
      %s607 = sld [smem:[#allocation5 + $0x30]]
      %v608 = vld [vmem:[#allocation3 + $0x6] sm:$0xff]
      %v609 = vld [vmem:[#allocation3 + $0xe] sm:$0xff]
      %v610 = vstv %s607
      %v611 = vmul.f32 %v610, %v608
      %v612 = vmul.f32 %v610, %v609
      %v613 = vadd.f32 %v605, %v611
      %v614 = vadd.f32 %v606, %v612
      %v615 = vld [vmem:[%s103] sm:$0xff]
      %v616 = vld [vmem:[%s103 + $0x8] sm:$0xff]
      %v617 = vld [vmem:[%s103 + $0x10] sm:$0x3f]
      %618 = vst.msk [vmem:[%s185] sm:$0xff] %vm109, %v615
      %619 = vst.msk [vmem:[%s185 + $0x8] sm:$0xff] %vm109, %v616
      %620 = vst.msk [vmem:[%s185 + $0x10] sm:$0x3f] %vm112, %v617
      %s621 = sld [smem:[#allocation5 + $0x31]]
      %v622 = vld [vmem:[%s185] sm:$0xff]
      %v623 = vld [vmem:[%s185 + $0x8] sm:$0xff]
      %v624 = vstv %s621
      %v625 = vmul.f32 %v624, %v622
      %v626 = vmul.f32 %v624, %v623
      %v627 = vadd.f32 %v391, %v625
      %v628 = vadd.f32 %v392, %v626
      %s629 = sld [smem:[#allocation5 + $0x38]]
      %v630 = vld [vmem:[%s185 + $0x1] sm:$0xff]
      %v631 = vld [vmem:[%s185 + $0x9] sm:$0xff]
      %v632 = vstv %s629
      %v633 = vmul.f32 %v632, %v630
      %v634 = vmul.f32 %v632, %v631
      %v635 = vadd.f32 %v627, %v633
      %v636 = vadd.f32 %v628, %v634
      %s637 = sld [smem:[#allocation5 + $0x3f]]
      %v638 = vld [vmem:[%s185 + $0x2] sm:$0xff]
      %v639 = vld [vmem:[%s185 + $0xa] sm:$0xff]
      %v640 = vstv %s637
      %v641 = vmul.f32 %v640, %v638
      %v642 = vmul.f32 %v640, %v639
      %v643 = vadd.f32 %v635, %v641
      %v644 = vadd.f32 %v636, %v642
      %s645 = sld [smem:[#allocation5 + $0x46]]
      %v646 = vld [vmem:[%s185 + $0x3] sm:$0xff]
      %v647 = vld [vmem:[%s185 + $0xb] sm:$0xff]
      %v648 = vstv %s645
      %v649 = vmul.f32 %v648, %v646
      %v650 = vmul.f32 %v648, %v647
      %v651 = vadd.f32 %v643, %v649
      %v652 = vadd.f32 %v644, %v650
      %s653 = sld [smem:[#allocation5 + $0x4d]]
      %v654 = vld [vmem:[%s185 + $0x4] sm:$0xff]
      %v655 = vld [vmem:[%s185 + $0xc] sm:$0xff]
      %v656 = vstv %s653
      %v657 = vmul.f32 %v656, %v654
      %v658 = vmul.f32 %v656, %v655
      %v659 = vadd.f32 %v651, %v657
      %v660 = vadd.f32 %v652, %v658
      %s661 = sld [smem:[#allocation5 + $0x54]]
      %v662 = vld [vmem:[%s185 + $0x5] sm:$0xff]
      %v663 = vld [vmem:[%s185 + $0xd] sm:$0xff]
      %v664 = vstv %s661
      %v665 = vmul.f32 %v664, %v662
      %v666 = vmul.f32 %v664, %v663
      %v667 = vadd.f32 %v659, %v665
      %v668 = vadd.f32 %v660, %v666
      %s669 = sld [smem:[#allocation5 + $0x5b]]
      %v670 = vld [vmem:[%s185 + $0x6] sm:$0xff]
      %v671 = vld [vmem:[%s185 + $0xe] sm:$0xff]
      %v672 = vstv %s669
      %v673 = vmul.f32 %v672, %v670
      %v674 = vmul.f32 %v672, %v671
      %v675 = vadd.f32 %v667, %v673
      %v676 = vadd.f32 %v668, %v674
      %v677 = vld [vmem:[%s103] sm:$0xff]
      %v678 = vld [vmem:[%s103 + $0x8] sm:$0xff]
      %v679 = vld [vmem:[%s103 + $0x10] sm:$0x3f]
      %683 = vrot.lane.b32.xlu0 %v677, 127
      %v684 = vpop.permute.xlu0 %683
      %685 = vrot.lane.b32.xlu0 %v678, 127
      %v686 = vpop.permute.xlu0 %685
      %687 = vrot.lane.b32.xlu0 %v679, 127
      %v688 = vpop.permute.xlu0 %687
      %692 = vst.msk [vmem:[#allocation3] sm:$0xff] %vm109, %v684
      %693 = vst.msk [vmem:[#allocation3 + $0x8] sm:$0xff] %vm109, %v686
      %694 = vst.msk [vmem:[#allocation3 + $0x10] sm:$0x3f] %vm112, %v688
      %s695 = sld [smem:[#allocation5 + $0x32]]
      %v696 = vld [vmem:[#allocation3] sm:$0xff]
      %v697 = vld [vmem:[#allocation3 + $0x8] sm:$0xff]
      %v698 = vstv %s695
      %v699 = vmul.f32 %v698, %v696
      %v700 = vmul.f32 %v698, %v697
      %v701 = vadd.f32 %v465, %v699
      %v702 = vadd.f32 %v466, %v700
      %s703 = sld [smem:[#allocation5 + $0x39]]
      %v704 = vld [vmem:[#allocation3 + $0x1] sm:$0xff]
      %v705 = vld [vmem:[#allocation3 + $0x9] sm:$0xff]
      %v706 = vstv %s703
      %v707 = vmul.f32 %v706, %v704
      %v708 = vmul.f32 %v706, %v705
      %v709 = vadd.f32 %v701, %v707
      %v710 = vadd.f32 %v702, %v708
      %s711 = sld [smem:[#allocation5 + $0x40]]
      %v712 = vld [vmem:[#allocation3 + $0x2] sm:$0xff]
      %v713 = vld [vmem:[#allocation3 + $0xa] sm:$0xff]
      %v714 = vstv %s711
      %v715 = vmul.f32 %v714, %v712
      %v716 = vmul.f32 %v714, %v713
      %v717 = vadd.f32 %v709, %v715
      %v718 = vadd.f32 %v710, %v716
      %s719 = sld [smem:[#allocation5 + $0x47]]
      %v720 = vld [vmem:[#allocation3 + $0x3] sm:$0xff]
      %v721 = vld [vmem:[#allocation3 + $0xb] sm:$0xff]
      %v722 = vstv %s719
      %v723 = vmul.f32 %v722, %v720
      %v724 = vmul.f32 %v722, %v721
      %v725 = vadd.f32 %v717, %v723
      %v726 = vadd.f32 %v718, %v724
      %s727 = sld [smem:[#allocation5 + $0x4e]]
      %v728 = vld [vmem:[#allocation3 + $0x4] sm:$0xff]
      %v729 = vld [vmem:[#allocation3 + $0xc] sm:$0xff]
      %v730 = vstv %s727
      %v731 = vmul.f32 %v730, %v728
      %v732 = vmul.f32 %v730, %v729
      %v733 = vadd.f32 %v725, %v731
      %v734 = vadd.f32 %v726, %v732
      %s735 = sld [smem:[#allocation5 + $0x55]]
      %v736 = vld [vmem:[#allocation3 + $0x5] sm:$0xff]
      %v737 = vld [vmem:[#allocation3 + $0xd] sm:$0xff]
      %v738 = vstv %s735
      %v739 = vmul.f32 %v738, %v736
      %v740 = vmul.f32 %v738, %v737
      %v741 = vadd.f32 %v733, %v739
      %v742 = vadd.f32 %v734, %v740
      %s743 = sld [smem:[#allocation5 + $0x5c]]
      %v744 = vld [vmem:[#allocation3 + $0x6] sm:$0xff]
      %v745 = vld [vmem:[#allocation3 + $0xe] sm:$0xff]
      %v746 = vstv %s743
      %v747 = vmul.f32 %v746, %v744
      %v748 = vmul.f32 %v746, %v745
      %v749 = vadd.f32 %v741, %v747
      %v750 = vadd.f32 %v742, %v748
      %v751 = vld [vmem:[%s103] sm:$0xff]
      %v752 = vld [vmem:[%s103 + $0x8] sm:$0xff]
      %v753 = vld [vmem:[%s103 + $0x10] sm:$0x3f]
      %757 = vrot.lane.b32.xlu0 %v751, 126
      %v758 = vpop.permute.xlu0 %757
      %759 = vrot.lane.b32.xlu0 %v752, 126
      %v760 = vpop.permute.xlu0 %759
      %761 = vrot.lane.b32.xlu0 %v753, 126
      %v762 = vpop.permute.xlu0 %761
      %766 = vst.msk [vmem:[%s185] sm:$0xff] %vm109, %v758
      %767 = vst.msk [vmem:[%s185 + $0x8] sm:$0xff] %vm109, %v760
      %768 = vst.msk [vmem:[%s185 + $0x10] sm:$0x3f] %vm112, %v762
      %s769 = sld [smem:[#allocation5 + $0x33]]
      %v770 = vld [vmem:[%s185] sm:$0xff]
      %v771 = vld [vmem:[%s185 + $0x8] sm:$0xff]
      %v772 = vstv %s769
      %v773 = vmul.f32 %v772, %v770
      %v774 = vmul.f32 %v772, %v771
      %v775 = vadd.f32 %v539, %v773
      %v776 = vadd.f32 %v540, %v774
      %s777 = sld [smem:[#allocation5 + $0x3a]]
      %v778 = vld [vmem:[%s185 + $0x1] sm:$0xff]
      %v779 = vld [vmem:[%s185 + $0x9] sm:$0xff]
      %v780 = vstv %s777
      %v781 = vmul.f32 %v780, %v778
      %v782 = vmul.f32 %v780, %v779
      %v783 = vadd.f32 %v775, %v781
      %v784 = vadd.f32 %v776, %v782
      %s785 = sld [smem:[#allocation5 + $0x41]]
      %v786 = vld [vmem:[%s185 + $0x2] sm:$0xff]
      %v787 = vld [vmem:[%s185 + $0xa] sm:$0xff]
      %v788 = vstv %s785
      %v789 = vmul.f32 %v788, %v786
      %v790 = vmul.f32 %v788, %v787
      %v791 = vadd.f32 %v783, %v789
      %v792 = vadd.f32 %v784, %v790
      %s793 = sld [smem:[#allocation5 + $0x48]]
      %v794 = vld [vmem:[%s185 + $0x3] sm:$0xff]
      %v795 = vld [vmem:[%s185 + $0xb] sm:$0xff]
      %v796 = vstv %s793
      %v797 = vmul.f32 %v796, %v794
      %v798 = vmul.f32 %v796, %v795
      %v799 = vadd.f32 %v791, %v797
      %v800 = vadd.f32 %v792, %v798
      %s801 = sld [smem:[#allocation5 + $0x4f]]
      %v802 = vld [vmem:[%s185 + $0x4] sm:$0xff]
      %v803 = vld [vmem:[%s185 + $0xc] sm:$0xff]
      %v804 = vstv %s801
      %v805 = vmul.f32 %v804, %v802
      %v806 = vmul.f32 %v804, %v803
      %v807 = vadd.f32 %v799, %v805
      %v808 = vadd.f32 %v800, %v806
      %s809 = sld [smem:[#allocation5 + $0x56]]
      %v810 = vld [vmem:[%s185 + $0x5] sm:$0xff]
      %v811 = vld [vmem:[%s185 + $0xd] sm:$0xff]
      %v812 = vstv %s809
      %v813 = vmul.f32 %v812, %v810
      %v814 = vmul.f32 %v812, %v811
      %v815 = vadd.f32 %v807, %v813
      %v816 = vadd.f32 %v808, %v814
      %s817 = sld [smem:[#allocation5 + $0x5d]]
      %v818 = vld [vmem:[%s185 + $0x6] sm:$0xff]
      %v819 = vld [vmem:[%s185 + $0xe] sm:$0xff]
      %v820 = vstv %s817
      %v821 = vmul.f32 %v820, %v818
      %v822 = vmul.f32 %v820, %v819
      %v823 = vadd.f32 %v815, %v821
      %v824 = vadd.f32 %v816, %v822
      %v825 = vld [vmem:[%s103] sm:$0xff]
      %v826 = vld [vmem:[%s103 + $0x8] sm:$0xff]
      %v827 = vld [vmem:[%s103 + $0x10] sm:$0x3f]
      %831 = vrot.lane.b32.xlu0 %v825, 125
      %v832 = vpop.permute.xlu0 %831
      %833 = vrot.lane.b32.xlu0 %v826, 125
      %v834 = vpop.permute.xlu0 %833
      %835 = vrot.lane.b32.xlu0 %v827, 125
      %v836 = vpop.permute.xlu0 %835
      %840 = vst.msk [vmem:[#allocation3] sm:$0xff] %vm109, %v832
      %841 = vst.msk [vmem:[#allocation3 + $0x8] sm:$0xff] %vm109, %v834
      %842 = vst.msk [vmem:[#allocation3 + $0x10] sm:$0x3f] %vm112, %v836
      %s843 = sld [smem:[#allocation5 + $0x34]]
      %v844 = vld [vmem:[#allocation3] sm:$0xff]
      %v845 = vld [vmem:[#allocation3 + $0x8] sm:$0xff]
      %v846 = vstv %s843
      %v847 = vmul.f32 %v846, %v844
      %v848 = vmul.f32 %v846, %v845
      %v849 = vadd.f32 %v613, %v847
      %v850 = vadd.f32 %v614, %v848
      %s851 = sld [smem:[#allocation5 + $0x3b]]
      %v852 = vld [vmem:[#allocation3 + $0x1] sm:$0xff]
      %v853 = vld [vmem:[#allocation3 + $0x9] sm:$0xff]
      %v854 = vstv %s851
      %v855 = vmul.f32 %v854, %v852
      %v856 = vmul.f32 %v854, %v853
      %v857 = vadd.f32 %v849, %v855
      %v858 = vadd.f32 %v850, %v856
      %s859 = sld [smem:[#allocation5 + $0x42]]
      %v860 = vld [vmem:[#allocation3 + $0x2] sm:$0xff]
      %v861 = vld [vmem:[#allocation3 + $0xa] sm:$0xff]
      %v862 = vstv %s859
      %v863 = vmul.f32 %v862, %v860
      %v864 = vmul.f32 %v862, %v861
      %v865 = vadd.f32 %v857, %v863
      %v866 = vadd.f32 %v858, %v864
      %s867 = sld [smem:[#allocation5 + $0x49]]
      %v868 = vld [vmem:[#allocation3 + $0x3] sm:$0xff]
      %v869 = vld [vmem:[#allocation3 + $0xb] sm:$0xff]
      %v870 = vstv %s867
      %v871 = vmul.f32 %v870, %v868
      %v872 = vmul.f32 %v870, %v869
      %v873 = vadd.f32 %v865, %v871
      %v874 = vadd.f32 %v866, %v872
      %s875 = sld [smem:[#allocation5 + $0x50]]
      %v876 = vld [vmem:[#allocation3 + $0x4] sm:$0xff]
      %v877 = vld [vmem:[#allocation3 + $0xc] sm:$0xff]
      %v878 = vstv %s875
      %v879 = vmul.f32 %v878, %v876
      %v880 = vmul.f32 %v878, %v877
      %v881 = vadd.f32 %v873, %v879
      %v882 = vadd.f32 %v874, %v880
      %s883 = sld [smem:[#allocation5 + $0x57]]
      %v884 = vld [vmem:[#allocation3 + $0x5] sm:$0xff]
      %v885 = vld [vmem:[#allocation3 + $0xd] sm:$0xff]
      %v886 = vstv %s883
      %v887 = vmul.f32 %v886, %v884
      %v888 = vmul.f32 %v886, %v885
      %v889 = vadd.f32 %v881, %v887
      %v890 = vadd.f32 %v882, %v888
      %s891 = sld [smem:[#allocation5 + $0x5e]]
      %v892 = vld [vmem:[#allocation3 + $0x6] sm:$0xff]
      %v893 = vld [vmem:[#allocation3 + $0xe] sm:$0xff]
      %v894 = vstv %s891
      %v895 = vmul.f32 %v894, %v892
      %v896 = vmul.f32 %v894, %v893
      %v897 = vadd.f32 %v889, %v895
      %v898 = vadd.f32 %v890, %v896
      %v899 = vld [vmem:[%s103] sm:$0xff]
      %v900 = vld [vmem:[%s103 + $0x8] sm:$0xff]
      %v901 = vld [vmem:[%s103 + $0x10] sm:$0x3f]
      %905 = vrot.lane.b32.xlu0 %v899, 124
      %v906 = vpop.permute.xlu0 %905
      %907 = vrot.lane.b32.xlu0 %v900, 124
      %v908 = vpop.permute.xlu0 %907
      %909 = vrot.lane.b32.xlu0 %v901, 124
      %v910 = vpop.permute.xlu0 %909
      %914 = vst.msk [vmem:[%s185] sm:$0xff] %vm109, %v906
      %915 = vst.msk [vmem:[%s185 + $0x8] sm:$0xff] %vm109, %v908
      %916 = vst.msk [vmem:[%s185 + $0x10] sm:$0x3f] %vm112, %v910
      %s917 = sld [smem:[#allocation5 + $0x35]]
      %v918 = vld [vmem:[%s185] sm:$0xff]
      %v919 = vld [vmem:[%s185 + $0x8] sm:$0xff]
      %v920 = vstv %s917
      %v921 = vmul.f32 %v920, %v918
      %v922 = vmul.f32 %v920, %v919
      %v923 = vadd.f32 %v675, %v921
      %v924 = vadd.f32 %v676, %v922
      %s925 = sld [smem:[#allocation5 + $0x3c]]
      %v926 = vld [vmem:[%s185 + $0x1] sm:$0xff]
      %v927 = vld [vmem:[%s185 + $0x9] sm:$0xff]
      %v928 = vstv %s925
      %v929 = vmul.f32 %v928, %v926
      %v930 = vmul.f32 %v928, %v927
      %v931 = vadd.f32 %v923, %v929
      %v932 = vadd.f32 %v924, %v930
      %s933 = sld [smem:[#allocation5 + $0x43]]
      %v934 = vld [vmem:[%s185 + $0x2] sm:$0xff]
      %v935 = vld [vmem:[%s185 + $0xa] sm:$0xff]
      %v936 = vstv %s933
      %v937 = vmul.f32 %v936, %v934
      %v938 = vmul.f32 %v936, %v935
      %v939 = vadd.f32 %v931, %v937
      %v940 = vadd.f32 %v932, %v938
      %s941 = sld [smem:[#allocation5 + $0x4a]]
      %v942 = vld [vmem:[%s185 + $0x3] sm:$0xff]
      %v943 = vld [vmem:[%s185 + $0xb] sm:$0xff]
      %v944 = vstv %s941
      %v945 = vmul.f32 %v944, %v942
      %v946 = vmul.f32 %v944, %v943
      %v947 = vadd.f32 %v939, %v945
      %v948 = vadd.f32 %v940, %v946
      %s949 = sld [smem:[#allocation5 + $0x51]]
      %v950 = vld [vmem:[%s185 + $0x4] sm:$0xff]
      %v951 = vld [vmem:[%s185 + $0xc] sm:$0xff]
      %v952 = vstv %s949
      %v953 = vmul.f32 %v952, %v950
      %v954 = vmul.f32 %v952, %v951
      %v955 = vadd.f32 %v947, %v953
      %v956 = vadd.f32 %v948, %v954
      %s957 = sld [smem:[#allocation5 + $0x58]]
      %v958 = vld [vmem:[%s185 + $0x5] sm:$0xff]
      %v959 = vld [vmem:[%s185 + $0xd] sm:$0xff]
      %v960 = vstv %s957
      %v961 = vmul.f32 %v960, %v958
      %v962 = vmul.f32 %v960, %v959
      %v963 = vadd.f32 %v955, %v961
      %v964 = vadd.f32 %v956, %v962
      %s965 = sld [smem:[#allocation5 + $0x5f]]
      %v966 = vld [vmem:[%s185 + $0x6] sm:$0xff]
      %v967 = vld [vmem:[%s185 + $0xe] sm:$0xff]
      %v968 = vstv %s965
      %v969 = vmul.f32 %v968, %v966
      %v970 = vmul.f32 %v968, %v967
      %v971 = vadd.f32 %v963, %v969
      %v972 = vadd.f32 %v964, %v970
      %v973 = vld [vmem:[%s103] sm:$0xff]
      %v974 = vld [vmem:[%s103 + $0x8] sm:$0xff]
      %v975 = vld [vmem:[%s103 + $0x10] sm:$0x3f]
      %979 = vrot.lane.b32.xlu0 %v973, 123
      %v980 = vpop.permute.xlu0 %979
      %981 = vrot.lane.b32.xlu0 %v974, 123
      %v982 = vpop.permute.xlu0 %981
      %983 = vrot.lane.b32.xlu0 %v975, 123
      %v984 = vpop.permute.xlu0 %983
      %988 = vst.msk [vmem:[#allocation3] sm:$0xff] %vm109, %v980
      %989 = vst.msk [vmem:[#allocation3 + $0x8] sm:$0xff] %vm109, %v982
      %990 = vst.msk [vmem:[#allocation3 + $0x10] sm:$0x3f] %vm112, %v984
      %s991 = sld [smem:[#allocation5 + $0x36]]
      %v992 = vld [vmem:[#allocation3] sm:$0xff]
      %v993 = vld [vmem:[#allocation3 + $0x8] sm:$0xff]
      %v994 = vstv %s991
      %v995 = vmul.f32 %v994, %v992
      %v996 = vmul.f32 %v994, %v993
      %v997 = vadd.f32 %v749, %v995
      %v998 = vadd.f32 %v750, %v996
      %s999 = sld [smem:[#allocation5 + $0x3d]]
      %v1000 = vld [vmem:[#allocation3 + $0x1] sm:$0xff]
      %v1001 = vld [vmem:[#allocation3 + $0x9] sm:$0xff]
      %v1002 = vstv %s999
      %v1003 = vmul.f32 %v1002, %v1000
      %v1004 = vmul.f32 %v1002, %v1001
      %v1005 = vadd.f32 %v997, %v1003
      %v1006 = vadd.f32 %v998, %v1004
      %s1007 = sld [smem:[#allocation5 + $0x44]]
      %v1008 = vld [vmem:[#allocation3 + $0x2] sm:$0xff]
      %v1009 = vld [vmem:[#allocation3 + $0xa] sm:$0xff]
      %v1010 = vstv %s1007
      %v1011 = vmul.f32 %v1010, %v1008
      %v1012 = vmul.f32 %v1010, %v1009
      %v1013 = vadd.f32 %v1005, %v1011
      %v1014 = vadd.f32 %v1006, %v1012
      %s1015 = sld [smem:[#allocation5 + $0x4b]]
      %v1016 = vld [vmem:[#allocation3 + $0x3] sm:$0xff]
      %v1017 = vld [vmem:[#allocation3 + $0xb] sm:$0xff]
      %v1018 = vstv %s1015
      %v1019 = vmul.f32 %v1018, %v1016
      %v1020 = vmul.f32 %v1018, %v1017
      %v1021 = vadd.f32 %v1013, %v1019
      %v1022 = vadd.f32 %v1014, %v1020
      %s1023 = sld [smem:[#allocation5 + $0x52]]
      %v1024 = vld [vmem:[#allocation3 + $0x4] sm:$0xff]
      %v1025 = vld [vmem:[#allocation3 + $0xc] sm:$0xff]
      %v1026 = vstv %s1023
      %v1027 = vmul.f32 %v1026, %v1024
      %v1028 = vmul.f32 %v1026, %v1025
      %v1029 = vadd.f32 %v1021, %v1027
      %v1030 = vadd.f32 %v1022, %v1028
      %s1031 = sld [smem:[#allocation5 + $0x59]]
      %v1032 = vld [vmem:[#allocation3 + $0x5] sm:$0xff]
      %v1033 = vld [vmem:[#allocation3 + $0xd] sm:$0xff]
      %v1034 = vstv %s1031
      %v1035 = vmul.f32 %v1034, %v1032
      %v1036 = vmul.f32 %v1034, %v1033
      %v1037 = vadd.f32 %v1029, %v1035
      %v1038 = vadd.f32 %v1030, %v1036
      %s1039 = sld [smem:[#allocation5 + $0x60]]
      %v1040 = vld [vmem:[#allocation3 + $0x6] sm:$0xff]
      %v1041 = vld [vmem:[#allocation3 + $0xe] sm:$0xff]
      %v1042 = vstv %s1039
      %v1043 = vmul.f32 %v1042, %v1040
      %v1044 = vmul.f32 %v1042, %v1041
      %v1045 = vadd.f32 %v1037, %v1043
      %v1046 = vadd.f32 %v1038, %v1044
      %v1047 = vld [vmem:[%s103] sm:$0xff]
      %v1048 = vld [vmem:[%s103 + $0x8] sm:$0xff]
      %v1049 = vld [vmem:[%s103 + $0x10] sm:$0x3f]
      %1053 = vrot.lane.b32.xlu0 %v1047, 122
      %v1054 = vpop.permute.xlu0 %1053
      %1055 = vrot.lane.b32.xlu0 %v1048, 122
      %v1056 = vpop.permute.xlu0 %1055
      %1057 = vrot.lane.b32.xlu0 %v1049, 122
      %v1058 = vpop.permute.xlu0 %1057
      %1062 = vst.msk [vmem:[%s185] sm:$0xff] %vm109, %v1054
      %1063 = vst.msk [vmem:[%s185 + $0x8] sm:$0xff] %vm109, %v1056
      %1064 = vst.msk [vmem:[%s185 + $0x10] sm:$0x3f] %vm112, %v1058
      %s1065 = sld [smem:[#allocation5 + $0x37]]
      %v1066 = vld [vmem:[%s185] sm:$0xff]
      %v1067 = vld [vmem:[%s185 + $0x8] sm:$0xff]
      %v1068 = vstv %s1065
      %v1069 = vmul.f32 %v1068, %v1066
      %v1070 = vmul.f32 %v1068, %v1067
      %v1071 = vadd.f32 %v823, %v1069
      %v1072 = vadd.f32 %v824, %v1070
      %s1073 = sld [smem:[#allocation5 + $0x3e]]
      %v1074 = vld [vmem:[%s185 + $0x1] sm:$0xff]
      %v1075 = vld [vmem:[%s185 + $0x9] sm:$0xff]
      %v1076 = vstv %s1073
      %v1077 = vmul.f32 %v1076, %v1074
      %v1078 = vmul.f32 %v1076, %v1075
      %v1079 = vadd.f32 %v1071, %v1077
      %v1080 = vadd.f32 %v1072, %v1078
      %s1081 = sld [smem:[#allocation5 + $0x45]]
      %v1082 = vld [vmem:[%s185 + $0x2] sm:$0xff]
      %v1083 = vld [vmem:[%s185 + $0xa] sm:$0xff]
      %v1084 = vstv %s1081
      %v1085 = vmul.f32 %v1084, %v1082
      %v1086 = vmul.f32 %v1084, %v1083
      %v1087 = vadd.f32 %v1079, %v1085
      %v1088 = vadd.f32 %v1080, %v1086
      %s1089 = sld [smem:[#allocation5 + $0x4c]]
      %v1090 = vld [vmem:[%s185 + $0x3] sm:$0xff]
      %v1091 = vld [vmem:[%s185 + $0xb] sm:$0xff]
      %v1092 = vstv %s1089
      %v1093 = vmul.f32 %v1092, %v1090
      %v1094 = vmul.f32 %v1092, %v1091
      %v1095 = vadd.f32 %v1087, %v1093
      %v1096 = vadd.f32 %v1088, %v1094
      %s1097 = sld [smem:[#allocation5 + $0x53]]
      %v1098 = vld [vmem:[%s185 + $0x4] sm:$0xff]
      %v1099 = vld [vmem:[%s185 + $0xc] sm:$0xff]
      %v1100 = vstv %s1097
      %v1101 = vmul.f32 %v1100, %v1098
      %v1102 = vmul.f32 %v1100, %v1099
      %v1103 = vadd.f32 %v1095, %v1101
      %v1104 = vadd.f32 %v1096, %v1102
      %s1105 = sld [smem:[#allocation5 + $0x5a]]
      %v1106 = vld [vmem:[%s185 + $0x5] sm:$0xff]
      %v1107 = vld [vmem:[%s185 + $0xd] sm:$0xff]
      %v1108 = vstv %s1105
      %v1109 = vmul.f32 %v1108, %v1106
      %v1110 = vmul.f32 %v1108, %v1107
      %v1111 = vadd.f32 %v1103, %v1109
      %v1112 = vadd.f32 %v1104, %v1110
      %s1113 = sld [smem:[#allocation5 + $0x61]]
      %v1114 = vld [vmem:[%s185 + $0x6] sm:$0xff]
      %v1115 = vld [vmem:[%s185 + $0xe] sm:$0xff]
      %v1116 = vstv %s1113
      %v1117 = vmul.f32 %v1116, %v1114
      %v1118 = vmul.f32 %v1116, %v1115
      %v1119 = vadd.f32 %v1111, %v1117
      %v1120 = vadd.f32 %v1112, %v1118
      %v1121 = vadd.f32 %v1045, %v1119
      %v1122 = vadd.f32 %v1046, %v1120
      %v1123 = vadd.f32 %v897, %v971
      %v1124 = vadd.f32 %v898, %v972
      %v1125 = vadd.f32 %v1121, %v1123
      %v1126 = vadd.f32 %v1122, %v1124
      %s1127 = sld [smem:[#allocation4]]
      %v1128 = vstv %s1127
      %v1129 = vadd.f32 %v1125, %v1128
      %v1130 = vadd.f32 %v1126, %v1128
      %v1131 = vxor.u32 %v1129, 2147483648
      %v1132 = vxor.u32 %v1130, 2147483648
      %v1133 = vmul.f32 %v1131, 1.442695
      %v1134 = vpow.pop %v1133
      %v1135 = vmul.f32 %v1132, 1.442695
      %v1136 = vpow.pop %v1135
      %v1137 = vadd.f32 %v1134, 1.0
      %v1138 = vadd.f32 %v1136, 1.0
      %v1139 = vrcp.pop %v1137
      %v1140 = vmul.f32 1.0, %v1139
      %v1141 = vrcp.pop %v1138
      %v1142 = vmul.f32 1.0, %v1141
      %v1143 = vld [vmem:[%s57] sm:$0xff]
      %v1144 = vld [vmem:[%s57 + $0x8] sm:$0xff]
      %v1145 = vmul.f32 %v1143, %v1140
      %v1146 = vmul.f32 %v1144, %v1142
      %s1147 = scalar_lea.vmem [#allocation8], %s56
      %1148 = vst.msk [vmem:[%s1147] sm:$0xff] %vm109, %v1145
      %1149 = vst.msk [vmem:[%s1147 + $0x8] sm:$0xff] %vm109, %v1146
      %v1150 = vld [vmem:[%s61] sm:$0xff]
      %v1151 = vld [vmem:[%s61 + $0x8] sm:$0xff]
      %v1152 = vmul.f32 %v1150, %v1140
      %v1153 = vmul.f32 %v1151, %v1142
      %s1154 = scalar_lea.vmem [#allocation8], %s60
      %1155 = vst.msk [vmem:[%s1154] sm:$0xff] %vm109, %v1152
      %1156 = vst.msk [vmem:[%s1154 + $0x8] sm:$0xff] %vm109, %v1153
      %v1157 = vld [vmem:[%s65] sm:$0xff]
      %v1158 = vld [vmem:[%s65 + $0x8] sm:$0xff]
      %v1159 = vmul.f32 %v1157, %v1140
      %v1160 = vmul.f32 %v1158, %v1142
      %s1161 = scalar_lea.vmem [#allocation8], %s64
      %1162 = vst.msk [vmem:[%s1161] sm:$0xff] %vm109, %v1159
      %1163 = vst.msk [vmem:[%s1161 + $0x8] sm:$0xff] %vm109, %v1160
      %v1164 = vld [vmem:[%s73] sm:$0xff]
      %v1165 = vld [vmem:[%s73 + $0x8] sm:$0xff]
      %v1166 = vmul.f32 %v1164, %v1140
      %v1167 = vmul.f32 %v1165, %v1142
      %s1168 = scalar_lea.vmem [#allocation8], %s72
      %1169 = vst.msk [vmem:[%s1168] sm:$0xff] %vm109, %v1166
      %1170 = vst.msk [vmem:[%s1168 + $0x8] sm:$0xff] %vm109, %v1167
    $region22: #{spatial_attention_block.1} parent=1 // loop_footer
      %s55 = sadd.s32 1, %s51
    $region23: #{spatial_attention_block.1} parent=1 // loop_footer_branch
      %50 = sbr.rel target = $region19
    $region24: #{spatial_attention_block.1} parent=1 // loop_exit
      _
    // Predicated region
    $region25: #{spatial_attention_block.1} parent=1 // pred_check
      _
    $region26: #{spatial_attention_block.1} parent=1 // pred_check_branch
      %1172 = sbr.rel (0) target = $region28
    $region27: #{spatial_attention_block.1} parent=1 // pred_region
      %s1174 = ssub.s32 2048, 2048
      %1175 = vsyncadd [#allocation6], %s1174
      %s1176 = sshll.u32 [#allocation8], 4
      %s1177 = int_to_ptr.vmem [resolvable:$true] %s1176
      %1182 = dma.vmem_to_hbm [thread:$0]  %s1177, 2048, %s3, [#allocation6], 128, 128, 8
    $region28: #{spatial_attention_block.1} parent=1 // pred_fallthru
      _
    // Predicated region
    $region29: #{spatial_attention_block.1} parent=1 // pred_check
      _
    $region30: #{spatial_attention_block.1} parent=1 // pred_check_branch
      %1184 = sbr.rel (0) target = $region32
    $region31: #{spatial_attention_block.1} parent=1 // pred_region
      %1185 = dma.done [#allocation6], 2048
    $region32: #{spatial_attention_block.1} parent=1 // pred_fallthru
      _
    %1186 = vsyncpa [#allocation6], 1
    %1187 = vsyncpa [#allocation7], 1

</llo_original>
